<compile_context>
chip_gen: v5e
topology: v5e:2x2
jax: 0.10.0
libtpu: 0.0.40
codegen_flags: <defaults>
</compile_context>

<pallas_src>
import jax
import jax.numpy as jnp
from jax.experimental import pallas as pl
from jax.experimental.pallas import tpu as pltpu

SUBCHUNK = 8  # packed rows (= 256 batch rows) per inner-loop step


def mlp_kernel(x_ref, w1_ref, b1_ref, w2_ref, b2_ref, o_ref):
    nsub = x_ref.shape[0] // SUBCHUNK      # static trip count
    cdtype = w1_ref.dtype                  # MXU operand dtype (bf16 by default)

    def body(i, carry):
        r0 = pl.multiple_of(i * SUBCHUNK, SUBCHUNK)
        xc = x_ref[pl.ds(r0, SUBCHUNK), :].astype(cdtype)            # (8, 128)
        # Layer 1 (block-diagonal): (8,128) @ (128,4096) -> (8,4096), f32 acc.
        h = jnp.dot(xc, w1_ref[...], preferred_element_type=jnp.float32)
        h = jnp.maximum(h + b1_ref[...], 0.0)                        # bias + ReLU (f32, VPU)
        # Layer 2 (block-diagonal): (8,4096) @ (4096,32) -> (8,32), f32 acc.
        y = jnp.dot(h.astype(cdtype), w2_ref[...],
                    preferred_element_type=jnp.float32)
        o_ref[pl.ds(r0, SUBCHUNK), :] = y + b2_ref[0, 0]
        return carry

    jax.lax.fori_loop(0, nsub, body, 0, unroll=min(8, nsub))


def mlp_forward(x, w1, b1, w2, b2, *, tm=32768, weight_dtype=jnp.bfloat16):
    """relu(x @ w1 + b1) @ w2 + b2  for x: (B, 4), w1: (4, 128), w2: (128, 1)."""
    B, K = x.shape
    H = w1.shape[1]
    assert 128 % K == 0
    G = 128 // K                       # batch rows packed per 128-lane row (= 32)
    q = SUBCHUNK * G                   # batch-row quantum per inner step (= 256)
    assert tm % q == 0, "tm must be a multiple of 256"

    # Shrink the tile for small batches (still a multiple of the quantum).
    tm = min(tm, q * pl.cdiv(B, q))
    grid = pl.cdiv(B, tm)
    Bp = grid * tm
    if Bp != B:
        x = jnp.pad(x, ((0, Bp - B), (0, 0)))

    # Lane-dense packed x: contiguous reshape, no transpose, no data movement.
    xp = x.reshape(Bp // G, G * K)                                   # (Bp/32, 128)

    # Block-diagonal weights: 32 copies of w1 / w2 on the diagonal, so each
    # 4-lane feature group only touches its own batch row's hidden block.
    eye = jnp.eye(G, dtype=jnp.float32)
    w1bd = jnp.kron(eye, w1.astype(jnp.float32)).astype(weight_dtype)  # (128, 4096)
    w2bd = jnp.kron(eye, w2.astype(jnp.float32)).astype(weight_dtype)  # (4096, 32)
    b1t = jnp.tile(b1.astype(jnp.float32).reshape(1, H), (1, G))       # (1, 4096)
    b2r = b2.reshape(1, 1).astype(jnp.float32)

    R = tm // G                        # packed rows per grid step

    cost = pl.CostEstimate(
        flops=2 * int(Bp) * (K * H + H),
        transcendentals=0,
        bytes_accessed=int(Bp) * (K * x.dtype.itemsize + 4)
        + w1bd.size * w1bd.dtype.itemsize
        + w2bd.size * w2bd.dtype.itemsize
        + b1t.size * 4 + 4,
    )

    out = pl.pallas_call(
        mlp_kernel,
        out_shape=jax.ShapeDtypeStruct((Bp // G, G), jnp.float32),
        grid=(grid,),
        in_specs=[
            pl.BlockSpec((R, G * K), lambda i: (i, 0)),      # packed x tile (pipelined)
            pl.BlockSpec((G * K, G * H), lambda i: (0, 0)),  # W1 block-diag (resident)
            pl.BlockSpec((1, G * H), lambda i: (0, 0)),      # b1 tiled   (resident)
            pl.BlockSpec((G * H, G), lambda i: (0, 0)),      # W2 block-diag (resident)
            pl.BlockSpec((1, 1), lambda i: (0, 0)),          # b2         (resident)
        ],
        out_specs=pl.BlockSpec((R, G), lambda i: (i, 0)),    # packed output tile
        compiler_params=pltpu.CompilerParams(
            dimension_semantics=("parallel",),               # megacore sharding on v7x
            vmem_limit_bytes=48 * 1024 * 1024,               # headroom, < v7x 64 MiB/TC
        ),
        cost_estimate=cost,
    )(xp, w1bd, b1t, w2bd, b2r)

    # (Bp/32, 32) packed rows -> (B, 1) column (contiguous reshape, drop padding).
    return out.reshape(Bp, 1)[:B]


def init_params(key):
    """PyTorch nn.Linear default init: U[-1/sqrt(fan_in), 1/sqrt(fan_in)]."""
    k1, k2, k3, k4 = jax.random.split(key, 4)
    in1, hid, out = 4, 128, 1
    bound1 = 1.0 / jnp.sqrt(in1)
    bound2 = 1.0 / jnp.sqrt(hid)
    w1 = jax.random.uniform(k1, (in1, hid), jnp.float32, -bound1, bound1)
    b1 = jax.random.uniform(k2, (hid,), jnp.float32, -bound1, bound1)
    w2 = jax.random.uniform(k3, (hid, out), jnp.float32, -bound2, bound2)
    b2 = jax.random.uniform(k4, (out,), jnp.float32, -bound2, bound2)
    return w1, b1, w2, b2


def mlp_ref(x, w1, b1, w2, b2):
    return jnp.maximum(x @ w1 + b1[None, :], 0.0) @ w2 + b2[None, :]


if __name__ == "__main__":
    key = jax.random.PRNGKey(0)
    kx, kx2, kp = jax.random.split(key, 3)
    w1, b1, w2, b2 = init_params(kp)

    # 1) Tiny batch, f32 MXU operands -> tight tolerance (single grid step).
    x_small = jax.random.normal(kx, (8, 4), jnp.float32)
    out_small = jax.block_until_ready(
        mlp_forward(x_small, w1, b1, w2, b2, weight_dtype=jnp.float32))
    ref_small = mlp_ref(x_small, w1, b1, w2, b2)
    assert out_small.shape == (8, 1)
    assert jnp.allclose(out_small, ref_small, atol=1e-4, rtol=1e-4)

    # 2) Non-multiple batch with a small tile -> multiple pipelined grid steps,
    #    default bf16 MXU operands (f32 accumulation) -> looser tolerance.
    x_big = jax.random.normal(kx2, (777, 4), jnp.float32)
    out_big = jax.block_until_ready(mlp_forward(x_big, w1, b1, w2, b2, tm=256))
    ref_big = mlp_ref(x_big, w1, b1, w2, b2)
    assert out_big.shape == (777, 1)
    assert jnp.allclose(out_big, ref_big, atol=3e-2, rtol=3e-2)

    # 3) bf16 x stream (halves the x HBM read if the producer emits bf16).
    out_bf16 = jax.block_until_ready(
        mlp_forward(x_big.astype(jnp.bfloat16), w1, b1, w2, b2))
    assert out_bf16.shape == (777, 1)
    assert jnp.allclose(out_bf16, ref_big, atol=3e-2, rtol=3e-2)

    print("KERNEL_OK")
</pallas_src>

<mosaic_0001>
module attributes {stable_mosaic.version = 11 : i64} {
  func.func @mlp_kernel(%arg0: i32, %arg1: memref<8x128xf32, #tpu.memory_space<vmem>>, %arg2: memref<128x4096xf32, #tpu.memory_space<vmem>>, %arg3: memref<1x4096xf32, #tpu.memory_space<vmem>>, %arg4: memref<4096x32xf32, #tpu.memory_space<vmem>>, %arg5: memref<1x1xf32, #tpu.memory_space<vmem>>, %arg6: memref<8x32xf32, #tpu.memory_space<vmem>>) attributes {dimension_semantics = [#tpu.dimension_semantics<parallel>], iteration_bounds = array<i64: 1>, scalar_prefetch = 0 : i64, scratch_operands = 0 : i64, tpu.core_type = #tpu.core_type<tc>, window_params = [{transform_indices = @transform_0, window_bounds = array<i64: 8, 128>}, {pipeline_mode = #tpu.pipeline_mode<synchronous>, transform_indices = @transform_1, window_bounds = array<i64: 128, 4096>}, {pipeline_mode = #tpu.pipeline_mode<synchronous>, transform_indices = @transform_2, window_bounds = array<i64: 1, 4096>}, {pipeline_mode = #tpu.pipeline_mode<synchronous>, transform_indices = @transform_3, window_bounds = array<i64: 4096, 32>}, {pipeline_mode = #tpu.pipeline_mode<synchronous>, transform_indices = @transform_4, window_bounds = array<i64: 1, 1>}, {transform_indices = @transform_5, window_bounds = array<i64: 8, 32>}]} {
    %c0_i32 = arith.constant 0 : i32
    %c8_i32 = arith.constant 8 : i32
    %0 = arith.muli %c0_i32, %c8_i32 : i32
    %1 = tpu.assume_multiple %0, 8 : i32
    %2 = arith.index_cast %1 : i32 to index
    %c0 = arith.constant 0 : index
    %3 = vector.load %arg1[%2, %c0] : memref<8x128xf32, #tpu.memory_space<vmem>>, vector<8x128xf32>
    %c0_0 = arith.constant 0 : index
    %c0_1 = arith.constant 0 : index
    %4 = vector.load %arg2[%c0_0, %c0_1] : memref<128x4096xf32, #tpu.memory_space<vmem>>, vector<128x4096xf32>
    %cst = arith.constant dense<0.000000e+00> : vector<8x4096xf32>
    %5 = tpu.matmul %3, %4, %cst {dimension_numbers = #tpu.dot_dimension_numbers<[1], [0], [0], [1], [0, 0, 1, 1], [], []>} : vector<8x128xf32>, vector<128x4096xf32>, vector<8x4096xf32> -> vector<8x4096xf32>
    %c0_2 = arith.constant 0 : index
    %c0_3 = arith.constant 0 : index
    %6 = vector.load %arg3[%c0_2, %c0_3] : memref<1x4096xf32, #tpu.memory_space<vmem>>, vector<1x4096xf32>
    %7 = vector.broadcast %6 : vector<1x4096xf32> to vector<8x4096xf32>
    %8 = arith.addf %5, %7 : vector<8x4096xf32>
    %cst_4 = arith.constant 0.000000e+00 : f32
    %9 = vector.broadcast %cst_4 : f32 to vector<8x4096xf32>
    %10 = arith.maximumf %8, %9 : vector<8x4096xf32>
    %c0_5 = arith.constant 0 : index
    %c0_6 = arith.constant 0 : index
    %11 = vector.load %arg4[%c0_5, %c0_6] : memref<4096x32xf32, #tpu.memory_space<vmem>>, vector<4096x32xf32>
    %cst_7 = arith.constant dense<0.000000e+00> : vector<8x32xf32>
    %12 = tpu.matmul %10, %11, %cst_7 {dimension_numbers = #tpu.dot_dimension_numbers<[1], [0], [0], [1], [0, 0, 1, 1], [], []>} : vector<8x4096xf32>, vector<4096x32xf32>, vector<8x32xf32> -> vector<8x32xf32>
    %c0_8 = arith.constant 0 : index
    %c0_9 = arith.constant 0 : index
    %13 = vector.load %arg5[%c0_8, %c0_9] : memref<1x1xf32, #tpu.memory_space<vmem>>, vector<1x1xf32>
    %14 = vector.extract %13[0, 0] : f32 from vector<1x1xf32>
    %15 = vector.broadcast %14 : f32 to vector<8x32xf32>
    %16 = arith.addf %12, %15 : vector<8x32xf32>
    %17 = arith.index_cast %1 : i32 to index
    %c0_10 = arith.constant 0 : index
    %18 = vector.load %arg6[%17, %c0_10] : memref<8x32xf32, #tpu.memory_space<vmem>>, vector<8x32xf32>
    tpu.vector_store %arg6[%17, %c0_10], %16 {strides = array<i32>} : memref<8x32xf32, #tpu.memory_space<vmem>>, vector<8x32xf32>,
    %c1_i32 = arith.constant 1 : i32
    return
  }
  func.func @transform_0(%arg0: i32) -> (i32, i32) {
    %c0_i32 = arith.constant 0 : i32
    %c0_i32_0 = arith.constant 0 : i32
    return %arg0, %c0_i32 : i32, i32
  }
  func.func @transform_1(%arg0: i32) -> (i32, i32) {
    %c0_i32 = arith.constant 0 : i32
    %c0_i32_0 = arith.constant 0 : i32
    %c0_i32_1 = arith.constant 0 : i32
    return %c0_i32, %c0_i32_0 : i32, i32
  }
  func.func @transform_2(%arg0: i32) -> (i32, i32) {
    %c0_i32 = arith.constant 0 : i32
    %c0_i32_0 = arith.constant 0 : i32
    %c0_i32_1 = arith.constant 0 : i32
    return %c0_i32, %c0_i32_0 : i32, i32
  }
  func.func @transform_3(%arg0: i32) -> (i32, i32) {
    %c0_i32 = arith.constant 0 : i32
    %c0_i32_0 = arith.constant 0 : i32
    %c0_i32_1 = arith.constant 0 : i32
    return %c0_i32, %c0_i32_0 : i32, i32
  }
  func.func @transform_4(%arg0: i32) -> (i32, i32) {
    %c0_i32 = arith.constant 0 : i32
    %c0_i32_0 = arith.constant 0 : i32
    %c0_i32_1 = arith.constant 0 : i32
    return %c0_i32, %c0_i32_0 : i32, i32
  }
  func.func @transform_5(%arg0: i32) -> (i32, i32) {
    %c0_i32 = arith.constant 0 : i32
    %c0_i32_0 = arith.constant 0 : i32
    return %arg0, %c0_i32 : i32, i32
  }
}

</mosaic_0001>

<llo_original>
// kernel: tpu_custom_call.1
$region0: #{tpu_custom_call.1}
  #allocation0 [shape = 'u32[]', space=smem, size = 0x4, offset = 0x4, fixed_abs, tag = 'smem constant byte address 0x4 - core index']
  #allocation1 [shape = 'u32[72,128]{1,0:T(1,128)}', space=vmem, size = 0x9000, scoped, tag = 'internal scratch']
  #allocation2 [shape = 'f32[1,1]{1,0:T(1,128)S(1)}', space=vmem, size = 0x200, scoped, tag = 'scoped memory for tpu_custom_call.1']
  %s0 = inlined_call_operand.vmem [shape: f32[8,128], index: 0, kind: input, shape index: {}]
  %s1 = inlined_call_operand.vmem [shape: f32[128,4096], index: 1, kind: input, shape index: {}]
  %s2 = inlined_call_operand.vmem [shape: f32[1,4096], index: 2, kind: input, shape index: {}]
  %s3 = inlined_call_operand.vmem [shape: f32[4096,32], index: 3, kind: input, shape index: {}]
  %s4 = inlined_call_operand.<no memory space> [shape: f32[1,1], index: 4, kind: input, shape index: {}]
  %s5 = inlined_call_operand.hbm [shape: f32[8,32], index: 5, kind: output, shape index: {}]
  %s6 = sld [smem:[#allocation0]]
  $region30: #{tpu_custom_call.1} parent=0
    _
  %s8 = ssub.s32 1, %s6
  %s9 = scalar_select 0, %s8, %s6
  %v10 = vstv %s4
  %11 = vst [vmem:[#allocation2] sm:$0x1] %v10
  $region1: #{tpu_custom_call.1} parent=0
    #allocation3 [shape = 'u8[4096]{0}', space=vmem, size = 0x1000, scoped, tag = 'output window, operand 0, single buffered']
    #allocation4 [shape = 's32[1]{0}', space=sflag, size = 0x4, scoped, tag = 'scoped memory for tpu_custom_call.1']
    %12 = vsyncpa [#allocation4], 0
    // Predicated region
    $region2: #{tpu_custom_call.1} parent=1 // pred_check
      _
    $region3: #{tpu_custom_call.1} parent=1 // pred_check_branch
      %14 = sbr.rel (0) target = $region5
    $region4: #{tpu_custom_call.1} parent=1 // pred_region
      _
    $region5: #{tpu_custom_call.1} parent=1 // pred_fallthru
      _
    // Predicated region
    $region6: #{tpu_custom_call.1} parent=1 // pred_check
      _
    $region7: #{tpu_custom_call.1} parent=1 // pred_check_branch
      %16 = sbr.rel (0) target = $region9
    $region8: #{tpu_custom_call.1} parent=1 // pred_region
      _
    $region9: #{tpu_custom_call.1} parent=1 // pred_fallthru
      _
    // Predicated region
    $region10: #{tpu_custom_call.1} parent=1 // pred_check
      _
    $region11: #{tpu_custom_call.1} parent=1 // pred_check_branch
      %18 = sbr.rel (0) target = $region13
    $region12: #{tpu_custom_call.1} parent=1 // pred_region
      _
    $region13: #{tpu_custom_call.1} parent=1 // pred_fallthru
      _
    // Predicated region
    $region14: #{tpu_custom_call.1} parent=1 // pred_check
      _
    $region15: #{tpu_custom_call.1} parent=1 // pred_check_branch
      %20 = sbr.rel (0) target = $region17
    $region16: #{tpu_custom_call.1} parent=1 // pred_region
      _
    $region17: #{tpu_custom_call.1} parent=1 // pred_fallthru
      _
    // Predicated region
    $region18: #{tpu_custom_call.1} parent=1 // pred_check
      _
    $region19: #{tpu_custom_call.1} parent=1 // pred_check_branch
      %22 = sbr.rel (0) target = $region21
    $region20: #{tpu_custom_call.1} parent=1 // pred_region
      _
    $region21: #{tpu_custom_call.1} parent=1 // pred_fallthru
      _
    %v23 = vld [vmem:[%s0] sm:$0xff]
    %v24 = vld [vmem:[%s1] sm:$0xff]
    %v25 = vld [vmem:[%s1 + $0x8] sm:$0xff]
    %v26 = vld [vmem:[%s1 + $0x10] sm:$0xff]
    %v27 = vld [vmem:[%s1 + $0x18] sm:$0xff]
    %v28 = vld [vmem:[%s1 + $0x20] sm:$0xff]
    %v29 = vld [vmem:[%s1 + $0x28] sm:$0xff]
    %v30 = vld [vmem:[%s1 + $0x30] sm:$0xff]
    %v31 = vld [vmem:[%s1 + $0x38] sm:$0xff]
    %v32 = vld [vmem:[%s1 + $0x40] sm:$0xff]
    %v33 = vld [vmem:[%s1 + $0x48] sm:$0xff]
    %v34 = vld [vmem:[%s1 + $0x50] sm:$0xff]
    %v35 = vld [vmem:[%s1 + $0x58] sm:$0xff]
    %v36 = vld [vmem:[%s1 + $0x60] sm:$0xff]
    %v37 = vld [vmem:[%s1 + $0x68] sm:$0xff]
    %v38 = vld [vmem:[%s1 + $0x70] sm:$0xff]
    %v39 = vld [vmem:[%s1 + $0x78] sm:$0xff]
    %v40 = vld [vmem:[%s1 + $0x80] sm:$0xff]
    %v41 = vld [vmem:[%s1 + $0x88] sm:$0xff]
    %v42 = vld [vmem:[%s1 + $0x90] sm:$0xff]
    %v43 = vld [vmem:[%s1 + $0x98] sm:$0xff]
    %v44 = vld [vmem:[%s1 + $0xa0] sm:$0xff]
    %v45 = vld [vmem:[%s1 + $0xa8] sm:$0xff]
    %v46 = vld [vmem:[%s1 + $0xb0] sm:$0xff]
    %v47 = vld [vmem:[%s1 + $0xb8] sm:$0xff]
    %v48 = vld [vmem:[%s1 + $0xc0] sm:$0xff]
    %v49 = vld [vmem:[%s1 + $0xc8] sm:$0xff]
    %v50 = vld [vmem:[%s1 + $0xd0] sm:$0xff]
    %v51 = vld [vmem:[%s1 + $0xd8] sm:$0xff]
    %v52 = vld [vmem:[%s1 + $0xe0] sm:$0xff]
    %v53 = vld [vmem:[%s1 + $0xe8] sm:$0xff]
    %v54 = vld [vmem:[%s1 + $0xf0] sm:$0xff]
    %v55 = vld [vmem:[%s1 + $0xf8] sm:$0xff]
    %v56 = vld [vmem:[%s1 + $0x100] sm:$0xff]
    %v57 = vld [vmem:[%s1 + $0x108] sm:$0xff]
    %v58 = vld [vmem:[%s1 + $0x110] sm:$0xff]
    %v59 = vld [vmem:[%s1 + $0x118] sm:$0xff]
    %v60 = vld [vmem:[%s1 + $0x120] sm:$0xff]
    %v61 = vld [vmem:[%s1 + $0x128] sm:$0xff]
    %v62 = vld [vmem:[%s1 + $0x130] sm:$0xff]
    %v63 = vld [vmem:[%s1 + $0x138] sm:$0xff]
    %v64 = vld [vmem:[%s1 + $0x140] sm:$0xff]
    %v65 = vld [vmem:[%s1 + $0x148] sm:$0xff]
    %v66 = vld [vmem:[%s1 + $0x150] sm:$0xff]
    %v67 = vld [vmem:[%s1 + $0x158] sm:$0xff]
    %v68 = vld [vmem:[%s1 + $0x160] sm:$0xff]
    %v69 = vld [vmem:[%s1 + $0x168] sm:$0xff]
    %v70 = vld [vmem:[%s1 + $0x170] sm:$0xff]
    %v71 = vld [vmem:[%s1 + $0x178] sm:$0xff]
    %v72 = vld [vmem:[%s1 + $0x180] sm:$0xff]
    %v73 = vld [vmem:[%s1 + $0x188] sm:$0xff]
    %v74 = vld [vmem:[%s1 + $0x190] sm:$0xff]
    %v75 = vld [vmem:[%s1 + $0x198] sm:$0xff]
    %v76 = vld [vmem:[%s1 + $0x1a0] sm:$0xff]
    %v77 = vld [vmem:[%s1 + $0x1a8] sm:$0xff]
    %v78 = vld [vmem:[%s1 + $0x1b0] sm:$0xff]
    %v79 = vld [vmem:[%s1 + $0x1b8] sm:$0xff]
    %v80 = vld [vmem:[%s1 + $0x1c0] sm:$0xff]
    %v81 = vld [vmem:[%s1 + $0x1c8] sm:$0xff]
    %v82 = vld [vmem:[%s1 + $0x1d0] sm:$0xff]
    %v83 = vld [vmem:[%s1 + $0x1d8] sm:$0xff]
    %v84 = vld [vmem:[%s1 + $0x1e0] sm:$0xff]
    %v85 = vld [vmem:[%s1 + $0x1e8] sm:$0xff]
    %v86 = vld [vmem:[%s1 + $0x1f0] sm:$0xff]
    %v87 = vld [vmem:[%s1 + $0x1f8] sm:$0xff]
    %v88 = vld [vmem:[%s1 + $0x200] sm:$0xff]
    %v89 = vld [vmem:[%s1 + $0x208] sm:$0xff]
    %v90 = vld [vmem:[%s1 + $0x210] sm:$0xff]
    %v91 = vld [vmem:[%s1 + $0x218] sm:$0xff]
    %v92 = vld [vmem:[%s1 + $0x220] sm:$0xff]
    %v93 = vld [vmem:[%s1 + $0x228] sm:$0xff]
    %v94 = vld [vmem:[%s1 + $0x230] sm:$0xff]
    %v95 = vld [vmem:[%s1 + $0x238] sm:$0xff]
    %v96 = vld [vmem:[%s1 + $0x240] sm:$0xff]
    %v97 = vld [vmem:[%s1 + $0x248] sm:$0xff]
    %v98 = vld [vmem:[%s1 + $0x250] sm:$0xff]
    %v99 = vld [vmem:[%s1 + $0x258] sm:$0xff]
    %v100 = vld [vmem:[%s1 + $0x260] sm:$0xff]
    %v101 = vld [vmem:[%s1 + $0x268] sm:$0xff]
    %v102 = vld [vmem:[%s1 + $0x270] sm:$0xff]
    %v103 = vld [vmem:[%s1 + $0x278] sm:$0xff]
    %v104 = vld [vmem:[%s1 + $0x280] sm:$0xff]
    %v105 = vld [vmem:[%s1 + $0x288] sm:$0xff]
    %v106 = vld [vmem:[%s1 + $0x290] sm:$0xff]
    %v107 = vld [vmem:[%s1 + $0x298] sm:$0xff]
    %v108 = vld [vmem:[%s1 + $0x2a0] sm:$0xff]
    %v109 = vld [vmem:[%s1 + $0x2a8] sm:$0xff]
    %v110 = vld [vmem:[%s1 + $0x2b0] sm:$0xff]
    %v111 = vld [vmem:[%s1 + $0x2b8] sm:$0xff]
    %v112 = vld [vmem:[%s1 + $0x2c0] sm:$0xff]
    %v113 = vld [vmem:[%s1 + $0x2c8] sm:$0xff]
    %v114 = vld [vmem:[%s1 + $0x2d0] sm:$0xff]
    %v115 = vld [vmem:[%s1 + $0x2d8] sm:$0xff]
    %v116 = vld [vmem:[%s1 + $0x2e0] sm:$0xff]
    %v117 = vld [vmem:[%s1 + $0x2e8] sm:$0xff]
    %v118 = vld [vmem:[%s1 + $0x2f0] sm:$0xff]
    %v119 = vld [vmem:[%s1 + $0x2f8] sm:$0xff]
    %v120 = vld [vmem:[%s1 + $0x300] sm:$0xff]
    %v121 = vld [vmem:[%s1 + $0x308] sm:$0xff]
    %v122 = vld [vmem:[%s1 + $0x310] sm:$0xff]
    %v123 = vld [vmem:[%s1 + $0x318] sm:$0xff]
    %v124 = vld [vmem:[%s1 + $0x320] sm:$0xff]
    %v125 = vld [vmem:[%s1 + $0x328] sm:$0xff]
    %v126 = vld [vmem:[%s1 + $0x330] sm:$0xff]
    %v127 = vld [vmem:[%s1 + $0x338] sm:$0xff]
    %v128 = vld [vmem:[%s1 + $0x340] sm:$0xff]
    %v129 = vld [vmem:[%s1 + $0x348] sm:$0xff]
    %v130 = vld [vmem:[%s1 + $0x350] sm:$0xff]
    %v131 = vld [vmem:[%s1 + $0x358] sm:$0xff]
    %v132 = vld [vmem:[%s1 + $0x360] sm:$0xff]
    %v133 = vld [vmem:[%s1 + $0x368] sm:$0xff]
    %v134 = vld [vmem:[%s1 + $0x370] sm:$0xff]
    %v135 = vld [vmem:[%s1 + $0x378] sm:$0xff]
    %v136 = vld [vmem:[%s1 + $0x380] sm:$0xff]
    %v137 = vld [vmem:[%s1 + $0x388] sm:$0xff]
    %v138 = vld [vmem:[%s1 + $0x390] sm:$0xff]
    %v139 = vld [vmem:[%s1 + $0x398] sm:$0xff]
    %v140 = vld [vmem:[%s1 + $0x3a0] sm:$0xff]
    %v141 = vld [vmem:[%s1 + $0x3a8] sm:$0xff]
    %v142 = vld [vmem:[%s1 + $0x3b0] sm:$0xff]
    %v143 = vld [vmem:[%s1 + $0x3b8] sm:$0xff]
    %v144 = vld [vmem:[%s1 + $0x3c0] sm:$0xff]
    %v145 = vld [vmem:[%s1 + $0x3c8] sm:$0xff]
    %v146 = vld [vmem:[%s1 + $0x3d0] sm:$0xff]
    %v147 = vld [vmem:[%s1 + $0x3d8] sm:$0xff]
    %v148 = vld [vmem:[%s1 + $0x3e0] sm:$0xff]
    %v149 = vld [vmem:[%s1 + $0x3e8] sm:$0xff]
    %v150 = vld [vmem:[%s1 + $0x3f0] sm:$0xff]
    %v151 = vld [vmem:[%s1 + $0x3f8] sm:$0xff]
    %v152 = vld [vmem:[%s1 + $0x400] sm:$0xff]
    %v153 = vld [vmem:[%s1 + $0x408] sm:$0xff]
    %v154 = vld [vmem:[%s1 + $0x410] sm:$0xff]
    %v155 = vld [vmem:[%s1 + $0x418] sm:$0xff]
    %v156 = vld [vmem:[%s1 + $0x420] sm:$0xff]
    %v157 = vld [vmem:[%s1 + $0x428] sm:$0xff]
    %v158 = vld [vmem:[%s1 + $0x430] sm:$0xff]
    %v159 = vld [vmem:[%s1 + $0x438] sm:$0xff]
    %v160 = vld [vmem:[%s1 + $0x440] sm:$0xff]
    %v161 = vld [vmem:[%s1 + $0x448] sm:$0xff]
    %v162 = vld [vmem:[%s1 + $0x450] sm:$0xff]
    %v163 = vld [vmem:[%s1 + $0x458] sm:$0xff]
    %v164 = vld [vmem:[%s1 + $0x460] sm:$0xff]
    %v165 = vld [vmem:[%s1 + $0x468] sm:$0xff]
    %v166 = vld [vmem:[%s1 + $0x470] sm:$0xff]
    %v167 = vld [vmem:[%s1 + $0x478] sm:$0xff]
    %v168 = vld [vmem:[%s1 + $0x480] sm:$0xff]
    %v169 = vld [vmem:[%s1 + $0x488] sm:$0xff]
    %v170 = vld [vmem:[%s1 + $0x490] sm:$0xff]
    %v171 = vld [vmem:[%s1 + $0x498] sm:$0xff]
    %v172 = vld [vmem:[%s1 + $0x4a0] sm:$0xff]
    %v173 = vld [vmem:[%s1 + $0x4a8] sm:$0xff]
    %v174 = vld [vmem:[%s1 + $0x4b0] sm:$0xff]
    %v175 = vld [vmem:[%s1 + $0x4b8] sm:$0xff]
    %v176 = vld [vmem:[%s1 + $0x4c0] sm:$0xff]
    %v177 = vld [vmem:[%s1 + $0x4c8] sm:$0xff]
    %v178 = vld [vmem:[%s1 + $0x4d0] sm:$0xff]
    %v179 = vld [vmem:[%s1 + $0x4d8] sm:$0xff]
    %v180 = vld [vmem:[%s1 + $0x4e0] sm:$0xff]
    %v181 = vld [vmem:[%s1 + $0x4e8] sm:$0xff]
    %v182 = vld [vmem:[%s1 + $0x4f0] sm:$0xff]
    %v183 = vld [vmem:[%s1 + $0x4f8] sm:$0xff]
    %v184 = vld [vmem:[%s1 + $0x500] sm:$0xff]
    %v185 = vld [vmem:[%s1 + $0x508] sm:$0xff]
    %v186 = vld [vmem:[%s1 + $0x510] sm:$0xff]
    %v187 = vld [vmem:[%s1 + $0x518] sm:$0xff]
    %v188 = vld [vmem:[%s1 + $0x520] sm:$0xff]
    %v189 = vld [vmem:[%s1 + $0x528] sm:$0xff]
    %v190 = vld [vmem:[%s1 + $0x530] sm:$0xff]
    %v191 = vld [vmem:[%s1 + $0x538] sm:$0xff]
    %v192 = vld [vmem:[%s1 + $0x540] sm:$0xff]
    %v193 = vld [vmem:[%s1 + $0x548] sm:$0xff]
    %v194 = vld [vmem:[%s1 + $0x550] sm:$0xff]
    %v195 = vld [vmem:[%s1 + $0x558] sm:$0xff]
    %v196 = vld [vmem:[%s1 + $0x560] sm:$0xff]
    %v197 = vld [vmem:[%s1 + $0x568] sm:$0xff]
    %v198 = vld [vmem:[%s1 + $0x570] sm:$0xff]
    %v199 = vld [vmem:[%s1 + $0x578] sm:$0xff]
    %v200 = vld [vmem:[%s1 + $0x580] sm:$0xff]
    %v201 = vld [vmem:[%s1 + $0x588] sm:$0xff]
    %v202 = vld [vmem:[%s1 + $0x590] sm:$0xff]
    %v203 = vld [vmem:[%s1 + $0x598] sm:$0xff]
    %v204 = vld [vmem:[%s1 + $0x5a0] sm:$0xff]
    %v205 = vld [vmem:[%s1 + $0x5a8] sm:$0xff]
    %v206 = vld [vmem:[%s1 + $0x5b0] sm:$0xff]
    %v207 = vld [vmem:[%s1 + $0x5b8] sm:$0xff]
    %v208 = vld [vmem:[%s1 + $0x5c0] sm:$0xff]
    %v209 = vld [vmem:[%s1 + $0x5c8] sm:$0xff]
    %v210 = vld [vmem:[%s1 + $0x5d0] sm:$0xff]
    %v211 = vld [vmem:[%s1 + $0x5d8] sm:$0xff]
    %v212 = vld [vmem:[%s1 + $0x5e0] sm:$0xff]
    %v213 = vld [vmem:[%s1 + $0x5e8] sm:$0xff]
    %v214 = vld [vmem:[%s1 + $0x5f0] sm:$0xff]
    %v215 = vld [vmem:[%s1 + $0x5f8] sm:$0xff]
    %v216 = vld [vmem:[%s1 + $0x600] sm:$0xff]
    %v217 = vld [vmem:[%s1 + $0x608] sm:$0xff]
    %v218 = vld [vmem:[%s1 + $0x610] sm:$0xff]
    %v219 = vld [vmem:[%s1 + $0x618] sm:$0xff]
    %v220 = vld [vmem:[%s1 + $0x620] sm:$0xff]
    %v221 = vld [vmem:[%s1 + $0x628] sm:$0xff]
    %v222 = vld [vmem:[%s1 + $0x630] sm:$0xff]
    %v223 = vld [vmem:[%s1 + $0x638] sm:$0xff]
    %v224 = vld [vmem:[%s1 + $0x640] sm:$0xff]
    %v225 = vld [vmem:[%s1 + $0x648] sm:$0xff]
    %v226 = vld [vmem:[%s1 + $0x650] sm:$0xff]
    %v227 = vld [vmem:[%s1 + $0x658] sm:$0xff]
    %v228 = vld [vmem:[%s1 + $0x660] sm:$0xff]
    %v229 = vld [vmem:[%s1 + $0x668] sm:$0xff]
    %v230 = vld [vmem:[%s1 + $0x670] sm:$0xff]
    %v231 = vld [vmem:[%s1 + $0x678] sm:$0xff]
    %v232 = vld [vmem:[%s1 + $0x680] sm:$0xff]
    %v233 = vld [vmem:[%s1 + $0x688] sm:$0xff]
    %v234 = vld [vmem:[%s1 + $0x690] sm:$0xff]
    %v235 = vld [vmem:[%s1 + $0x698] sm:$0xff]
    %v236 = vld [vmem:[%s1 + $0x6a0] sm:$0xff]
    %v237 = vld [vmem:[%s1 + $0x6a8] sm:$0xff]
    %v238 = vld [vmem:[%s1 + $0x6b0] sm:$0xff]
    %v239 = vld [vmem:[%s1 + $0x6b8] sm:$0xff]
    %v240 = vld [vmem:[%s1 + $0x6c0] sm:$0xff]
    %v241 = vld [vmem:[%s1 + $0x6c8] sm:$0xff]
    %v242 = vld [vmem:[%s1 + $0x6d0] sm:$0xff]
    %v243 = vld [vmem:[%s1 + $0x6d8] sm:$0xff]
    %v244 = vld [vmem:[%s1 + $0x6e0] sm:$0xff]
    %v245 = vld [vmem:[%s1 + $0x6e8] sm:$0xff]
    %v246 = vld [vmem:[%s1 + $0x6f0] sm:$0xff]
    %v247 = vld [vmem:[%s1 + $0x6f8] sm:$0xff]
    %v248 = vld [vmem:[%s1 + $0x700] sm:$0xff]
    %v249 = vld [vmem:[%s1 + $0x708] sm:$0xff]
    %v250 = vld [vmem:[%s1 + $0x710] sm:$0xff]
    %v251 = vld [vmem:[%s1 + $0x718] sm:$0xff]
    %v252 = vld [vmem:[%s1 + $0x720] sm:$0xff]
    %v253 = vld [vmem:[%s1 + $0x728] sm:$0xff]
    %v254 = vld [vmem:[%s1 + $0x730] sm:$0xff]
    %v255 = vld [vmem:[%s1 + $0x738] sm:$0xff]
    %v256 = vld [vmem:[%s1 + $0x740] sm:$0xff]
    %v257 = vld [vmem:[%s1 + $0x748] sm:$0xff]
    %v258 = vld [vmem:[%s1 + $0x750] sm:$0xff]
    %v259 = vld [vmem:[%s1 + $0x758] sm:$0xff]
    %v260 = vld [vmem:[%s1 + $0x760] sm:$0xff]
    %v261 = vld [vmem:[%s1 + $0x768] sm:$0xff]
    %v262 = vld [vmem:[%s1 + $0x770] sm:$0xff]
    %v263 = vld [vmem:[%s1 + $0x778] sm:$0xff]
    %v264 = vld [vmem:[%s1 + $0x780] sm:$0xff]
    %v265 = vld [vmem:[%s1 + $0x788] sm:$0xff]
    %v266 = vld [vmem:[%s1 + $0x790] sm:$0xff]
    %v267 = vld [vmem:[%s1 + $0x798] sm:$0xff]
    %v268 = vld [vmem:[%s1 + $0x7a0] sm:$0xff]
    %v269 = vld [vmem:[%s1 + $0x7a8] sm:$0xff]
    %v270 = vld [vmem:[%s1 + $0x7b0] sm:$0xff]
    %v271 = vld [vmem:[%s1 + $0x7b8] sm:$0xff]
    %v272 = vld [vmem:[%s1 + $0x7c0] sm:$0xff]
    %v273 = vld [vmem:[%s1 + $0x7c8] sm:$0xff]
    %v274 = vld [vmem:[%s1 + $0x7d0] sm:$0xff]
    %v275 = vld [vmem:[%s1 + $0x7d8] sm:$0xff]
    %v276 = vld [vmem:[%s1 + $0x7e0] sm:$0xff]
    %v277 = vld [vmem:[%s1 + $0x7e8] sm:$0xff]
    %v278 = vld [vmem:[%s1 + $0x7f0] sm:$0xff]
    %v279 = vld [vmem:[%s1 + $0x7f8] sm:$0xff]
    %v280 = vld [vmem:[%s1 + $0x800] sm:$0xff]
    %v281 = vld [vmem:[%s1 + $0x808] sm:$0xff]
    %v282 = vld [vmem:[%s1 + $0x810] sm:$0xff]
    %v283 = vld [vmem:[%s1 + $0x818] sm:$0xff]
    %v284 = vld [vmem:[%s1 + $0x820] sm:$0xff]
    %v285 = vld [vmem:[%s1 + $0x828] sm:$0xff]
    %v286 = vld [vmem:[%s1 + $0x830] sm:$0xff]
    %v287 = vld [vmem:[%s1 + $0x838] sm:$0xff]
    %v288 = vld [vmem:[%s1 + $0x840] sm:$0xff]
    %v289 = vld [vmem:[%s1 + $0x848] sm:$0xff]
    %v290 = vld [vmem:[%s1 + $0x850] sm:$0xff]
    %v291 = vld [vmem:[%s1 + $0x858] sm:$0xff]
    %v292 = vld [vmem:[%s1 + $0x860] sm:$0xff]
    %v293 = vld [vmem:[%s1 + $0x868] sm:$0xff]
    %v294 = vld [vmem:[%s1 + $0x870] sm:$0xff]
    %v295 = vld [vmem:[%s1 + $0x878] sm:$0xff]
    %v296 = vld [vmem:[%s1 + $0x880] sm:$0xff]
    %v297 = vld [vmem:[%s1 + $0x888] sm:$0xff]
    %v298 = vld [vmem:[%s1 + $0x890] sm:$0xff]
    %v299 = vld [vmem:[%s1 + $0x898] sm:$0xff]
    %v300 = vld [vmem:[%s1 + $0x8a0] sm:$0xff]
    %v301 = vld [vmem:[%s1 + $0x8a8] sm:$0xff]
    %v302 = vld [vmem:[%s1 + $0x8b0] sm:$0xff]
    %v303 = vld [vmem:[%s1 + $0x8b8] sm:$0xff]
    %v304 = vld [vmem:[%s1 + $0x8c0] sm:$0xff]
    %v305 = vld [vmem:[%s1 + $0x8c8] sm:$0xff]
    %v306 = vld [vmem:[%s1 + $0x8d0] sm:$0xff]
    %v307 = vld [vmem:[%s1 + $0x8d8] sm:$0xff]
    %v308 = vld [vmem:[%s1 + $0x8e0] sm:$0xff]
    %v309 = vld [vmem:[%s1 + $0x8e8] sm:$0xff]
    %v310 = vld [vmem:[%s1 + $0x8f0] sm:$0xff]
    %v311 = vld [vmem:[%s1 + $0x8f8] sm:$0xff]
    %v312 = vld [vmem:[%s1 + $0x900] sm:$0xff]
    %v313 = vld [vmem:[%s1 + $0x908] sm:$0xff]
    %v314 = vld [vmem:[%s1 + $0x910] sm:$0xff]
    %v315 = vld [vmem:[%s1 + $0x918] sm:$0xff]
    %v316 = vld [vmem:[%s1 + $0x920] sm:$0xff]
    %v317 = vld [vmem:[%s1 + $0x928] sm:$0xff]
    %v318 = vld [vmem:[%s1 + $0x930] sm:$0xff]
    %v319 = vld [vmem:[%s1 + $0x938] sm:$0xff]
    %v320 = vld [vmem:[%s1 + $0x940] sm:$0xff]
    %v321 = vld [vmem:[%s1 + $0x948] sm:$0xff]
    %v322 = vld [vmem:[%s1 + $0x950] sm:$0xff]
    %v323 = vld [vmem:[%s1 + $0x958] sm:$0xff]
    %v324 = vld [vmem:[%s1 + $0x960] sm:$0xff]
    %v325 = vld [vmem:[%s1 + $0x968] sm:$0xff]
    %v326 = vld [vmem:[%s1 + $0x970] sm:$0xff]
    %v327 = vld [vmem:[%s1 + $0x978] sm:$0xff]
    %v328 = vld [vmem:[%s1 + $0x980] sm:$0xff]
    %v329 = vld [vmem:[%s1 + $0x988] sm:$0xff]
    %v330 = vld [vmem:[%s1 + $0x990] sm:$0xff]
    %v331 = vld [vmem:[%s1 + $0x998] sm:$0xff]
    %v332 = vld [vmem:[%s1 + $0x9a0] sm:$0xff]
    %v333 = vld [vmem:[%s1 + $0x9a8] sm:$0xff]
    %v334 = vld [vmem:[%s1 + $0x9b0] sm:$0xff]
    %v335 = vld [vmem:[%s1 + $0x9b8] sm:$0xff]
    %v336 = vld [vmem:[%s1 + $0x9c0] sm:$0xff]
    %v337 = vld [vmem:[%s1 + $0x9c8] sm:$0xff]
    %v338 = vld [vmem:[%s1 + $0x9d0] sm:$0xff]
    %v339 = vld [vmem:[%s1 + $0x9d8] sm:$0xff]
    %v340 = vld [vmem:[%s1 + $0x9e0] sm:$0xff]
    %v341 = vld [vmem:[%s1 + $0x9e8] sm:$0xff]
    %v342 = vld [vmem:[%s1 + $0x9f0] sm:$0xff]
    %v343 = vld [vmem:[%s1 + $0x9f8] sm:$0xff]
    %v344 = vld [vmem:[%s1 + $0xa00] sm:$0xff]
    %v345 = vld [vmem:[%s1 + $0xa08] sm:$0xff]
    %v346 = vld [vmem:[%s1 + $0xa10] sm:$0xff]
    %v347 = vld [vmem:[%s1 + $0xa18] sm:$0xff]
    %v348 = vld [vmem:[%s1 + $0xa20] sm:$0xff]
    %v349 = vld [vmem:[%s1 + $0xa28] sm:$0xff]
    %v350 = vld [vmem:[%s1 + $0xa30] sm:$0xff]
    %v351 = vld [vmem:[%s1 + $0xa38] sm:$0xff]
    %v352 = vld [vmem:[%s1 + $0xa40] sm:$0xff]
    %v353 = vld [vmem:[%s1 + $0xa48] sm:$0xff]
    %v354 = vld [vmem:[%s1 + $0xa50] sm:$0xff]
    %v355 = vld [vmem:[%s1 + $0xa58] sm:$0xff]
    %v356 = vld [vmem:[%s1 + $0xa60] sm:$0xff]
    %v357 = vld [vmem:[%s1 + $0xa68] sm:$0xff]
    %v358 = vld [vmem:[%s1 + $0xa70] sm:$0xff]
    %v359 = vld [vmem:[%s1 + $0xa78] sm:$0xff]
    %v360 = vld [vmem:[%s1 + $0xa80] sm:$0xff]
    %v361 = vld [vmem:[%s1 + $0xa88] sm:$0xff]
    %v362 = vld [vmem:[%s1 + $0xa90] sm:$0xff]
    %v363 = vld [vmem:[%s1 + $0xa98] sm:$0xff]
    %v364 = vld [vmem:[%s1 + $0xaa0] sm:$0xff]
    %v365 = vld [vmem:[%s1 + $0xaa8] sm:$0xff]
    %v366 = vld [vmem:[%s1 + $0xab0] sm:$0xff]
    %v367 = vld [vmem:[%s1 + $0xab8] sm:$0xff]
    %v368 = vld [vmem:[%s1 + $0xac0] sm:$0xff]
    %v369 = vld [vmem:[%s1 + $0xac8] sm:$0xff]
    %v370 = vld [vmem:[%s1 + $0xad0] sm:$0xff]
    %v371 = vld [vmem:[%s1 + $0xad8] sm:$0xff]
    %v372 = vld [vmem:[%s1 + $0xae0] sm:$0xff]
    %v373 = vld [vmem:[%s1 + $0xae8] sm:$0xff]
    %v374 = vld [vmem:[%s1 + $0xaf0] sm:$0xff]
    %v375 = vld [vmem:[%s1 + $0xaf8] sm:$0xff]
    %v376 = vld [vmem:[%s1 + $0xb00] sm:$0xff]
    %v377 = vld [vmem:[%s1 + $0xb08] sm:$0xff]
    %v378 = vld [vmem:[%s1 + $0xb10] sm:$0xff]
    %v379 = vld [vmem:[%s1 + $0xb18] sm:$0xff]
    %v380 = vld [vmem:[%s1 + $0xb20] sm:$0xff]
    %v381 = vld [vmem:[%s1 + $0xb28] sm:$0xff]
    %v382 = vld [vmem:[%s1 + $0xb30] sm:$0xff]
    %v383 = vld [vmem:[%s1 + $0xb38] sm:$0xff]
    %v384 = vld [vmem:[%s1 + $0xb40] sm:$0xff]
    %v385 = vld [vmem:[%s1 + $0xb48] sm:$0xff]
    %v386 = vld [vmem:[%s1 + $0xb50] sm:$0xff]
    %v387 = vld [vmem:[%s1 + $0xb58] sm:$0xff]
    %v388 = vld [vmem:[%s1 + $0xb60] sm:$0xff]
    %v389 = vld [vmem:[%s1 + $0xb68] sm:$0xff]
    %v390 = vld [vmem:[%s1 + $0xb70] sm:$0xff]
    %v391 = vld [vmem:[%s1 + $0xb78] sm:$0xff]
    %v392 = vld [vmem:[%s1 + $0xb80] sm:$0xff]
    %v393 = vld [vmem:[%s1 + $0xb88] sm:$0xff]
    %v394 = vld [vmem:[%s1 + $0xb90] sm:$0xff]
    %v395 = vld [vmem:[%s1 + $0xb98] sm:$0xff]
    %v396 = vld [vmem:[%s1 + $0xba0] sm:$0xff]
    %v397 = vld [vmem:[%s1 + $0xba8] sm:$0xff]
    %v398 = vld [vmem:[%s1 + $0xbb0] sm:$0xff]
    %v399 = vld [vmem:[%s1 + $0xbb8] sm:$0xff]
    %v400 = vld [vmem:[%s1 + $0xbc0] sm:$0xff]
    %v401 = vld [vmem:[%s1 + $0xbc8] sm:$0xff]
    %v402 = vld [vmem:[%s1 + $0xbd0] sm:$0xff]
    %v403 = vld [vmem:[%s1 + $0xbd8] sm:$0xff]
    %v404 = vld [vmem:[%s1 + $0xbe0] sm:$0xff]
    %v405 = vld [vmem:[%s1 + $0xbe8] sm:$0xff]
    %v406 = vld [vmem:[%s1 + $0xbf0] sm:$0xff]
    %v407 = vld [vmem:[%s1 + $0xbf8] sm:$0xff]
    %v408 = vld [vmem:[%s1 + $0xc00] sm:$0xff]
    %v409 = vld [vmem:[%s1 + $0xc08] sm:$0xff]
    %v410 = vld [vmem:[%s1 + $0xc10] sm:$0xff]
    %v411 = vld [vmem:[%s1 + $0xc18] sm:$0xff]
    %v412 = vld [vmem:[%s1 + $0xc20] sm:$0xff]
    %v413 = vld [vmem:[%s1 + $0xc28] sm:$0xff]
    %v414 = vld [vmem:[%s1 + $0xc30] sm:$0xff]
    %v415 = vld [vmem:[%s1 + $0xc38] sm:$0xff]
    %v416 = vld [vmem:[%s1 + $0xc40] sm:$0xff]
    %v417 = vld [vmem:[%s1 + $0xc48] sm:$0xff]
    %v418 = vld [vmem:[%s1 + $0xc50] sm:$0xff]
    %v419 = vld [vmem:[%s1 + $0xc58] sm:$0xff]
    %v420 = vld [vmem:[%s1 + $0xc60] sm:$0xff]
    %v421 = vld [vmem:[%s1 + $0xc68] sm:$0xff]
    %v422 = vld [vmem:[%s1 + $0xc70] sm:$0xff]
    %v423 = vld [vmem:[%s1 + $0xc78] sm:$0xff]
    %v424 = vld [vmem:[%s1 + $0xc80] sm:$0xff]
    %v425 = vld [vmem:[%s1 + $0xc88] sm:$0xff]
    %v426 = vld [vmem:[%s1 + $0xc90] sm:$0xff]
    %v427 = vld [vmem:[%s1 + $0xc98] sm:$0xff]
    %v428 = vld [vmem:[%s1 + $0xca0] sm:$0xff]
    %v429 = vld [vmem:[%s1 + $0xca8] sm:$0xff]
    %v430 = vld [vmem:[%s1 + $0xcb0] sm:$0xff]
    %v431 = vld [vmem:[%s1 + $0xcb8] sm:$0xff]
    %v432 = vld [vmem:[%s1 + $0xcc0] sm:$0xff]
    %v433 = vld [vmem:[%s1 + $0xcc8] sm:$0xff]
    %v434 = vld [vmem:[%s1 + $0xcd0] sm:$0xff]
    %v435 = vld [vmem:[%s1 + $0xcd8] sm:$0xff]
    %v436 = vld [vmem:[%s1 + $0xce0] sm:$0xff]
    %v437 = vld [vmem:[%s1 + $0xce8] sm:$0xff]
    %v438 = vld [vmem:[%s1 + $0xcf0] sm:$0xff]
    %v439 = vld [vmem:[%s1 + $0xcf8] sm:$0xff]
    %v440 = vld [vmem:[%s1 + $0xd00] sm:$0xff]
    %v441 = vld [vmem:[%s1 + $0xd08] sm:$0xff]
    %v442 = vld [vmem:[%s1 + $0xd10] sm:$0xff]
    %v443 = vld [vmem:[%s1 + $0xd18] sm:$0xff]
    %v444 = vld [vmem:[%s1 + $0xd20] sm:$0xff]
    %v445 = vld [vmem:[%s1 + $0xd28] sm:$0xff]
    %v446 = vld [vmem:[%s1 + $0xd30] sm:$0xff]
    %v447 = vld [vmem:[%s1 + $0xd38] sm:$0xff]
    %v448 = vld [vmem:[%s1 + $0xd40] sm:$0xff]
    %v449 = vld [vmem:[%s1 + $0xd48] sm:$0xff]
    %v450 = vld [vmem:[%s1 + $0xd50] sm:$0xff]
    %v451 = vld [vmem:[%s1 + $0xd58] sm:$0xff]
    %v452 = vld [vmem:[%s1 + $0xd60] sm:$0xff]
    %v453 = vld [vmem:[%s1 + $0xd68] sm:$0xff]
    %v454 = vld [vmem:[%s1 + $0xd70] sm:$0xff]
    %v455 = vld [vmem:[%s1 + $0xd78] sm:$0xff]
    %v456 = vld [vmem:[%s1 + $0xd80] sm:$0xff]
    %v457 = vld [vmem:[%s1 + $0xd88] sm:$0xff]
    %v458 = vld [vmem:[%s1 + $0xd90] sm:$0xff]
    %v459 = vld [vmem:[%s1 + $0xd98] sm:$0xff]
    %v460 = vld [vmem:[%s1 + $0xda0] sm:$0xff]
    %v461 = vld [vmem:[%s1 + $0xda8] sm:$0xff]
    %v462 = vld [vmem:[%s1 + $0xdb0] sm:$0xff]
    %v463 = vld [vmem:[%s1 + $0xdb8] sm:$0xff]
    %v464 = vld [vmem:[%s1 + $0xdc0] sm:$0xff]
    %v465 = vld [vmem:[%s1 + $0xdc8] sm:$0xff]
    %v466 = vld [vmem:[%s1 + $0xdd0] sm:$0xff]
    %v467 = vld [vmem:[%s1 + $0xdd8] sm:$0xff]
    %v468 = vld [vmem:[%s1 + $0xde0] sm:$0xff]
    %v469 = vld [vmem:[%s1 + $0xde8] sm:$0xff]
    %v470 = vld [vmem:[%s1 + $0xdf0] sm:$0xff]
    %v471 = vld [vmem:[%s1 + $0xdf8] sm:$0xff]
    %v472 = vld [vmem:[%s1 + $0xe00] sm:$0xff]
    %v473 = vld [vmem:[%s1 + $0xe08] sm:$0xff]
    %v474 = vld [vmem:[%s1 + $0xe10] sm:$0xff]
    %v475 = vld [vmem:[%s1 + $0xe18] sm:$0xff]
    %v476 = vld [vmem:[%s1 + $0xe20] sm:$0xff]
    %v477 = vld [vmem:[%s1 + $0xe28] sm:$0xff]
    %v478 = vld [vmem:[%s1 + $0xe30] sm:$0xff]
    %v479 = vld [vmem:[%s1 + $0xe38] sm:$0xff]
    %v480 = vld [vmem:[%s1 + $0xe40] sm:$0xff]
    %v481 = vld [vmem:[%s1 + $0xe48] sm:$0xff]
    %v482 = vld [vmem:[%s1 + $0xe50] sm:$0xff]
    %v483 = vld [vmem:[%s1 + $0xe58] sm:$0xff]
    %v484 = vld [vmem:[%s1 + $0xe60] sm:$0xff]
    %v485 = vld [vmem:[%s1 + $0xe68] sm:$0xff]
    %v486 = vld [vmem:[%s1 + $0xe70] sm:$0xff]
    %v487 = vld [vmem:[%s1 + $0xe78] sm:$0xff]
    %v488 = vld [vmem:[%s1 + $0xe80] sm:$0xff]
    %v489 = vld [vmem:[%s1 + $0xe88] sm:$0xff]
    %v490 = vld [vmem:[%s1 + $0xe90] sm:$0xff]
    %v491 = vld [vmem:[%s1 + $0xe98] sm:$0xff]
    %v492 = vld [vmem:[%s1 + $0xea0] sm:$0xff]
    %v493 = vld [vmem:[%s1 + $0xea8] sm:$0xff]
    %v494 = vld [vmem:[%s1 + $0xeb0] sm:$0xff]
    %v495 = vld [vmem:[%s1 + $0xeb8] sm:$0xff]
    %v496 = vld [vmem:[%s1 + $0xec0] sm:$0xff]
    %v497 = vld [vmem:[%s1 + $0xec8] sm:$0xff]
    %v498 = vld [vmem:[%s1 + $0xed0] sm:$0xff]
    %v499 = vld [vmem:[%s1 + $0xed8] sm:$0xff]
    %v500 = vld [vmem:[%s1 + $0xee0] sm:$0xff]
    %v501 = vld [vmem:[%s1 + $0xee8] sm:$0xff]
    %v502 = vld [vmem:[%s1 + $0xef0] sm:$0xff]
    %v503 = vld [vmem:[%s1 + $0xef8] sm:$0xff]
    %v504 = vld [vmem:[%s1 + $0xf00] sm:$0xff]
    %v505 = vld [vmem:[%s1 + $0xf08] sm:$0xff]
    %v506 = vld [vmem:[%s1 + $0xf10] sm:$0xff]
    %v507 = vld [vmem:[%s1 + $0xf18] sm:$0xff]
    %v508 = vld [vmem:[%s1 + $0xf20] sm:$0xff]
    %v509 = vld [vmem:[%s1 + $0xf28] sm:$0xff]
    %v510 = vld [vmem:[%s1 + $0xf30] sm:$0xff]
    %v511 = vld [vmem:[%s1 + $0xf38] sm:$0xff]
    %v512 = vld [vmem:[%s1 + $0xf40] sm:$0xff]
    %v513 = vld [vmem:[%s1 + $0xf48] sm:$0xff]
    %v514 = vld [vmem:[%s1 + $0xf50] sm:$0xff]
    %v515 = vld [vmem:[%s1 + $0xf58] sm:$0xff]
    %v516 = vld [vmem:[%s1 + $0xf60] sm:$0xff]
    %v517 = vld [vmem:[%s1 + $0xf68] sm:$0xff]
    %v518 = vld [vmem:[%s1 + $0xf70] sm:$0xff]
    %v519 = vld [vmem:[%s1 + $0xf78] sm:$0xff]
    %v520 = vld [vmem:[%s1 + $0xf80] sm:$0xff]
    %v521 = vld [vmem:[%s1 + $0xf88] sm:$0xff]
    %v522 = vld [vmem:[%s1 + $0xf90] sm:$0xff]
    %v523 = vld [vmem:[%s1 + $0xf98] sm:$0xff]
    %v524 = vld [vmem:[%s1 + $0xfa0] sm:$0xff]
    %v525 = vld [vmem:[%s1 + $0xfa8] sm:$0xff]
    %v526 = vld [vmem:[%s1 + $0xfb0] sm:$0xff]
    %v527 = vld [vmem:[%s1 + $0xfb8] sm:$0xff]
    %v528 = vld [vmem:[%s1 + $0xfc0] sm:$0xff]
    %v529 = vld [vmem:[%s1 + $0xfc8] sm:$0xff]
    %v530 = vld [vmem:[%s1 + $0xfd0] sm:$0xff]
    %v531 = vld [vmem:[%s1 + $0xfd8] sm:$0xff]
    %v532 = vld [vmem:[%s1 + $0xfe0] sm:$0xff]
    %v533 = vld [vmem:[%s1 + $0xfe8] sm:$0xff]
    %v534 = vld [vmem:[%s1 + $0xff0] sm:$0xff]
    %v535 = vld [vmem:[%s1 + $0xff8] sm:$0xff]
    %v536 = vld [vmem:[%s2] sm:$0xff]
    %v537 = vld [vmem:[%s2 + $0x8] sm:$0xff]
    %v538 = vld [vmem:[%s2 + $0x10] sm:$0xff]
    %v539 = vld [vmem:[%s2 + $0x18] sm:$0xff]
    %v544 = vperm.slane %v536, 0
    %v545 = vperm.slane %v536, 1
    %v546 = vperm.slane %v536, 2
    %v547 = vperm.slane %v536, 3
    %v548 = vperm.slane %v536, 4
    %v549 = vperm.slane %v536, 5
    %v550 = vperm.slane %v536, 6
    %v551 = vperm.slane %v536, 7
    %v552 = vperm.slane %v537, 0
    %v553 = vperm.slane %v537, 1
    %v554 = vperm.slane %v537, 2
    %v555 = vperm.slane %v537, 3
    %v556 = vperm.slane %v537, 4
    %v557 = vperm.slane %v537, 5
    %v558 = vperm.slane %v537, 6
    %v559 = vperm.slane %v537, 7
    %v560 = vperm.slane %v538, 0
    %v561 = vperm.slane %v538, 1
    %v562 = vperm.slane %v538, 2
    %v563 = vperm.slane %v538, 3
    %v564 = vperm.slane %v538, 4
    %v565 = vperm.slane %v538, 5
    %v566 = vperm.slane %v538, 6
    %v567 = vperm.slane %v538, 7
    %v568 = vperm.slane %v539, 0
    %v569 = vperm.slane %v539, 1
    %v570 = vperm.slane %v539, 2
    %v571 = vperm.slane %v539, 3
    %v572 = vperm.slane %v539, 4
    %v573 = vperm.slane %v539, 5
    %v574 = vperm.slane %v539, 6
    %v575 = vperm.slane %v539, 7
    %608 = vmatpush.msra.mxu0 %v504
    %609 = vmatpush.msra.mxu0 %v472
    %610 = vmatpush.msra.mxu0 %v440
    %611 = vmatpush.msra.mxu0 %v408
    %612 = vmatpush.msra.mxu0 %v376
    %613 = vmatpush.msra.mxu0 %v344
    %614 = vmatpush.msra.mxu0 %v312
    %615 = vmatpush.msra.mxu0 %v280
    %616 = vmatpush.msra.mxu0 %v248
    %617 = vmatpush.msra.mxu0 %v216
    %618 = vmatpush.msra.mxu0 %v184
    %619 = vmatpush.msra.mxu0 %v152
    %620 = vmatpush.msra.mxu0 %v120
    %621 = vmatpush.msra.mxu0 %v88
    %622 = vmatpush.msra.mxu0 %v56
    %623 = vmatpush.msra.mxu0 %v24
    %624 = vmatmul.f32.gmra.mxu0 %v23
    %v625 = vpop.f32.mrf.mxu0
    %v626 = vadd.f32 %v544, %v625
    %627 = vdwg.mxu0
    %628 = vmatpush.msra.mxu0 %v505
    %629 = vmatpush.msra.mxu0 %v473
    %630 = vmatpush.msra.mxu0 %v441
    %631 = vmatpush.msra.mxu0 %v409
    %632 = vmatpush.msra.mxu0 %v377
    %633 = vmatpush.msra.mxu0 %v345
    %634 = vmatpush.msra.mxu0 %v313
    %635 = vmatpush.msra.mxu0 %v281
    %636 = vmatpush.msra.mxu0 %v249
    %637 = vmatpush.msra.mxu0 %v217
    %638 = vmatpush.msra.mxu0 %v185
    %639 = vmatpush.msra.mxu0 %v153
    %640 = vmatpush.msra.mxu0 %v121
    %641 = vmatpush.msra.mxu0 %v89
    %642 = vmatpush.msra.mxu0 %v57
    %643 = vmatpush.msra.mxu0 %v25
    %644 = vmatmul.f32.gmra.mxu0 %v23
    %v645 = vpop.f32.mrf.mxu0
    %v646 = vadd.f32 %v545, %v645
    %647 = vdwg.mxu0
    %648 = vmatpush.msra.mxu0 %v506
    %649 = vmatpush.msra.mxu0 %v474
    %650 = vmatpush.msra.mxu0 %v442
    %651 = vmatpush.msra.mxu0 %v410
    %652 = vmatpush.msra.mxu0 %v378
    %653 = vmatpush.msra.mxu0 %v346
    %654 = vmatpush.msra.mxu0 %v314
    %655 = vmatpush.msra.mxu0 %v282
    %656 = vmatpush.msra.mxu0 %v250
    %657 = vmatpush.msra.mxu0 %v218
    %658 = vmatpush.msra.mxu0 %v186
    %659 = vmatpush.msra.mxu0 %v154
    %660 = vmatpush.msra.mxu0 %v122
    %661 = vmatpush.msra.mxu0 %v90
    %662 = vmatpush.msra.mxu0 %v58
    %663 = vmatpush.msra.mxu0 %v26
    %664 = vmatmul.f32.gmra.mxu0 %v23
    %v665 = vpop.f32.mrf.mxu0
    %v666 = vadd.f32 %v546, %v665
    %667 = vdwg.mxu0
    %668 = vmatpush.msra.mxu0 %v507
    %669 = vmatpush.msra.mxu0 %v475
    %670 = vmatpush.msra.mxu0 %v443
    %671 = vmatpush.msra.mxu0 %v411
    %672 = vmatpush.msra.mxu0 %v379
    %673 = vmatpush.msra.mxu0 %v347
    %674 = vmatpush.msra.mxu0 %v315
    %675 = vmatpush.msra.mxu0 %v283
    %676 = vmatpush.msra.mxu0 %v251
    %677 = vmatpush.msra.mxu0 %v219
    %678 = vmatpush.msra.mxu0 %v187
    %679 = vmatpush.msra.mxu0 %v155
    %680 = vmatpush.msra.mxu0 %v123
    %681 = vmatpush.msra.mxu0 %v91
    %682 = vmatpush.msra.mxu0 %v59
    %683 = vmatpush.msra.mxu0 %v27
    %684 = vmatmul.f32.gmra.mxu0 %v23
    %v685 = vpop.f32.mrf.mxu0
    %v686 = vadd.f32 %v547, %v685
    %687 = vdwg.mxu0
    %688 = vmatpush.msra.mxu0 %v508
    %689 = vmatpush.msra.mxu0 %v476
    %690 = vmatpush.msra.mxu0 %v444
    %691 = vmatpush.msra.mxu0 %v412
    %692 = vmatpush.msra.mxu0 %v380
    %693 = vmatpush.msra.mxu0 %v348
    %694 = vmatpush.msra.mxu0 %v316
    %695 = vmatpush.msra.mxu0 %v284
    %696 = vmatpush.msra.mxu0 %v252
    %697 = vmatpush.msra.mxu0 %v220
    %698 = vmatpush.msra.mxu0 %v188
    %699 = vmatpush.msra.mxu0 %v156
    %700 = vmatpush.msra.mxu0 %v124
    %701 = vmatpush.msra.mxu0 %v92
    %702 = vmatpush.msra.mxu0 %v60
    %703 = vmatpush.msra.mxu0 %v28
    %704 = vmatmul.f32.gmra.mxu0 %v23
    %v705 = vpop.f32.mrf.mxu0
    %v706 = vadd.f32 %v548, %v705
    %707 = vdwg.mxu0
    %708 = vmatpush.msra.mxu0 %v509
    %709 = vmatpush.msra.mxu0 %v477
    %710 = vmatpush.msra.mxu0 %v445
    %711 = vmatpush.msra.mxu0 %v413
    %712 = vmatpush.msra.mxu0 %v381
    %713 = vmatpush.msra.mxu0 %v349
    %714 = vmatpush.msra.mxu0 %v317
    %715 = vmatpush.msra.mxu0 %v285
    %716 = vmatpush.msra.mxu0 %v253
    %717 = vmatpush.msra.mxu0 %v221
    %718 = vmatpush.msra.mxu0 %v189
    %719 = vmatpush.msra.mxu0 %v157
    %720 = vmatpush.msra.mxu0 %v125
    %721 = vmatpush.msra.mxu0 %v93
    %722 = vmatpush.msra.mxu0 %v61
    %723 = vmatpush.msra.mxu0 %v29
    %724 = vmatmul.f32.gmra.mxu0 %v23
    %v725 = vpop.f32.mrf.mxu0
    %v726 = vadd.f32 %v549, %v725
    %727 = vdwg.mxu0
    %728 = vmatpush.msra.mxu0 %v510
    %729 = vmatpush.msra.mxu0 %v478
    %730 = vmatpush.msra.mxu0 %v446
    %731 = vmatpush.msra.mxu0 %v414
    %732 = vmatpush.msra.mxu0 %v382
    %733 = vmatpush.msra.mxu0 %v350
    %734 = vmatpush.msra.mxu0 %v318
    %735 = vmatpush.msra.mxu0 %v286
    %736 = vmatpush.msra.mxu0 %v254
    %737 = vmatpush.msra.mxu0 %v222
    %738 = vmatpush.msra.mxu0 %v190
    %739 = vmatpush.msra.mxu0 %v158
    %740 = vmatpush.msra.mxu0 %v126
    %741 = vmatpush.msra.mxu0 %v94
    %742 = vmatpush.msra.mxu0 %v62
    %743 = vmatpush.msra.mxu0 %v30
    %744 = vmatmul.f32.gmra.mxu0 %v23
    %v745 = vpop.f32.mrf.mxu0
    %v746 = vadd.f32 %v550, %v745
    %747 = vdwg.mxu0
    %748 = vmatpush.msra.mxu0 %v511
    %749 = vmatpush.msra.mxu0 %v479
    %750 = vmatpush.msra.mxu0 %v447
    %751 = vmatpush.msra.mxu0 %v415
    %752 = vmatpush.msra.mxu0 %v383
    %753 = vmatpush.msra.mxu0 %v351
    %754 = vmatpush.msra.mxu0 %v319
    %755 = vmatpush.msra.mxu0 %v287
    %756 = vmatpush.msra.mxu0 %v255
    %757 = vmatpush.msra.mxu0 %v223
    %758 = vmatpush.msra.mxu0 %v191
    %759 = vmatpush.msra.mxu0 %v159
    %760 = vmatpush.msra.mxu0 %v127
    %761 = vmatpush.msra.mxu0 %v95
    %762 = vmatpush.msra.mxu0 %v63
    %763 = vmatpush.msra.mxu0 %v31
    %764 = vmatmul.f32.gmra.mxu0 %v23
    %v765 = vpop.f32.mrf.mxu0
    %v766 = vadd.f32 %v551, %v765
    %767 = vdwg.mxu0
    %768 = vmatpush.msra.mxu0 %v512
    %769 = vmatpush.msra.mxu0 %v480
    %770 = vmatpush.msra.mxu0 %v448
    %771 = vmatpush.msra.mxu0 %v416
    %772 = vmatpush.msra.mxu0 %v384
    %773 = vmatpush.msra.mxu0 %v352
    %774 = vmatpush.msra.mxu0 %v320
    %775 = vmatpush.msra.mxu0 %v288
    %776 = vmatpush.msra.mxu0 %v256
    %777 = vmatpush.msra.mxu0 %v224
    %778 = vmatpush.msra.mxu0 %v192
    %779 = vmatpush.msra.mxu0 %v160
    %780 = vmatpush.msra.mxu0 %v128
    %781 = vmatpush.msra.mxu0 %v96
    %782 = vmatpush.msra.mxu0 %v64
    %783 = vmatpush.msra.mxu0 %v32
    %784 = vmatmul.f32.gmra.mxu0 %v23
    %v785 = vpop.f32.mrf.mxu0
    %v786 = vadd.f32 %v552, %v785
    %787 = vdwg.mxu0
    %788 = vmatpush.msra.mxu0 %v513
    %789 = vmatpush.msra.mxu0 %v481
    %790 = vmatpush.msra.mxu0 %v449
    %791 = vmatpush.msra.mxu0 %v417
    %792 = vmatpush.msra.mxu0 %v385
    %793 = vmatpush.msra.mxu0 %v353
    %794 = vmatpush.msra.mxu0 %v321
    %795 = vmatpush.msra.mxu0 %v289
    %796 = vmatpush.msra.mxu0 %v257
    %797 = vmatpush.msra.mxu0 %v225
    %798 = vmatpush.msra.mxu0 %v193
    %799 = vmatpush.msra.mxu0 %v161
    %800 = vmatpush.msra.mxu0 %v129
    %801 = vmatpush.msra.mxu0 %v97
    %802 = vmatpush.msra.mxu0 %v65
    %803 = vmatpush.msra.mxu0 %v33
    %804 = vmatmul.f32.gmra.mxu0 %v23
    %v805 = vpop.f32.mrf.mxu0
    %v806 = vadd.f32 %v553, %v805
    %807 = vdwg.mxu0
    %808 = vmatpush.msra.mxu0 %v514
    %809 = vmatpush.msra.mxu0 %v482
    %810 = vmatpush.msra.mxu0 %v450
    %811 = vmatpush.msra.mxu0 %v418
    %812 = vmatpush.msra.mxu0 %v386
    %813 = vmatpush.msra.mxu0 %v354
    %814 = vmatpush.msra.mxu0 %v322
    %815 = vmatpush.msra.mxu0 %v290
    %816 = vmatpush.msra.mxu0 %v258
    %817 = vmatpush.msra.mxu0 %v226
    %818 = vmatpush.msra.mxu0 %v194
    %819 = vmatpush.msra.mxu0 %v162
    %820 = vmatpush.msra.mxu0 %v130
    %821 = vmatpush.msra.mxu0 %v98
    %822 = vmatpush.msra.mxu0 %v66
    %823 = vmatpush.msra.mxu0 %v34
    %824 = vmatmul.f32.gmra.mxu0 %v23
    %v825 = vpop.f32.mrf.mxu0
    %v826 = vadd.f32 %v554, %v825
    %827 = vdwg.mxu0
    %828 = vmatpush.msra.mxu0 %v515
    %829 = vmatpush.msra.mxu0 %v483
    %830 = vmatpush.msra.mxu0 %v451
    %831 = vmatpush.msra.mxu0 %v419
    %832 = vmatpush.msra.mxu0 %v387
    %833 = vmatpush.msra.mxu0 %v355
    %834 = vmatpush.msra.mxu0 %v323
    %835 = vmatpush.msra.mxu0 %v291
    %836 = vmatpush.msra.mxu0 %v259
    %837 = vmatpush.msra.mxu0 %v227
    %838 = vmatpush.msra.mxu0 %v195
    %839 = vmatpush.msra.mxu0 %v163
    %840 = vmatpush.msra.mxu0 %v131
    %841 = vmatpush.msra.mxu0 %v99
    %842 = vmatpush.msra.mxu0 %v67
    %843 = vmatpush.msra.mxu0 %v35
    %844 = vmatmul.f32.gmra.mxu0 %v23
    %v845 = vpop.f32.mrf.mxu0
    %v846 = vadd.f32 %v555, %v845
    %847 = vdwg.mxu0
    %848 = vmatpush.msra.mxu0 %v516
    %849 = vmatpush.msra.mxu0 %v484
    %850 = vmatpush.msra.mxu0 %v452
    %851 = vmatpush.msra.mxu0 %v420
    %852 = vmatpush.msra.mxu0 %v388
    %853 = vmatpush.msra.mxu0 %v356
    %854 = vmatpush.msra.mxu0 %v324
    %855 = vmatpush.msra.mxu0 %v292
    %856 = vmatpush.msra.mxu0 %v260
    %857 = vmatpush.msra.mxu0 %v228
    %858 = vmatpush.msra.mxu0 %v196
    %859 = vmatpush.msra.mxu0 %v164
    %860 = vmatpush.msra.mxu0 %v132
    %861 = vmatpush.msra.mxu0 %v100
    %862 = vmatpush.msra.mxu0 %v68
    %863 = vmatpush.msra.mxu0 %v36
    %864 = vmatmul.f32.gmra.mxu0 %v23
    %v865 = vpop.f32.mrf.mxu0
    %v866 = vadd.f32 %v556, %v865
    %867 = vdwg.mxu0
    %868 = vmatpush.msra.mxu0 %v517
    %869 = vmatpush.msra.mxu0 %v485
    %870 = vmatpush.msra.mxu0 %v453
    %871 = vmatpush.msra.mxu0 %v421
    %872 = vmatpush.msra.mxu0 %v389
    %873 = vmatpush.msra.mxu0 %v357
    %874 = vmatpush.msra.mxu0 %v325
    %875 = vmatpush.msra.mxu0 %v293
    %876 = vmatpush.msra.mxu0 %v261
    %877 = vmatpush.msra.mxu0 %v229
    %878 = vmatpush.msra.mxu0 %v197
    %879 = vmatpush.msra.mxu0 %v165
    %880 = vmatpush.msra.mxu0 %v133
    %881 = vmatpush.msra.mxu0 %v101
    %882 = vmatpush.msra.mxu0 %v69
    %883 = vmatpush.msra.mxu0 %v37
    %884 = vmatmul.f32.gmra.mxu0 %v23
    %v885 = vpop.f32.mrf.mxu0
    %v886 = vadd.f32 %v557, %v885
    %887 = vdwg.mxu0
    %888 = vmatpush.msra.mxu0 %v518
    %889 = vmatpush.msra.mxu0 %v486
    %890 = vmatpush.msra.mxu0 %v454
    %891 = vmatpush.msra.mxu0 %v422
    %892 = vmatpush.msra.mxu0 %v390
    %893 = vmatpush.msra.mxu0 %v358
    %894 = vmatpush.msra.mxu0 %v326
    %895 = vmatpush.msra.mxu0 %v294
    %896 = vmatpush.msra.mxu0 %v262
    %897 = vmatpush.msra.mxu0 %v230
    %898 = vmatpush.msra.mxu0 %v198
    %899 = vmatpush.msra.mxu0 %v166
    %900 = vmatpush.msra.mxu0 %v134
    %901 = vmatpush.msra.mxu0 %v102
    %902 = vmatpush.msra.mxu0 %v70
    %903 = vmatpush.msra.mxu0 %v38
    %904 = vmatmul.f32.gmra.mxu0 %v23
    %v905 = vpop.f32.mrf.mxu0
    %v906 = vadd.f32 %v558, %v905
    %907 = vdwg.mxu0
    %908 = vmatpush.msra.mxu0 %v519
    %909 = vmatpush.msra.mxu0 %v487
    %910 = vmatpush.msra.mxu0 %v455
    %911 = vmatpush.msra.mxu0 %v423
    %912 = vmatpush.msra.mxu0 %v391
    %913 = vmatpush.msra.mxu0 %v359
    %914 = vmatpush.msra.mxu0 %v327
    %915 = vmatpush.msra.mxu0 %v295
    %916 = vmatpush.msra.mxu0 %v263
    %917 = vmatpush.msra.mxu0 %v231
    %918 = vmatpush.msra.mxu0 %v199
    %919 = vmatpush.msra.mxu0 %v167
    %920 = vmatpush.msra.mxu0 %v135
    %921 = vmatpush.msra.mxu0 %v103
    %922 = vmatpush.msra.mxu0 %v71
    %923 = vmatpush.msra.mxu0 %v39
    %924 = vmatmul.f32.gmra.mxu0 %v23
    %v925 = vpop.f32.mrf.mxu0
    %v926 = vadd.f32 %v559, %v925
    %927 = vdwg.mxu0
    %928 = vmatpush.msra.mxu0 %v520
    %929 = vmatpush.msra.mxu0 %v488
    %930 = vmatpush.msra.mxu0 %v456
    %931 = vmatpush.msra.mxu0 %v424
    %932 = vmatpush.msra.mxu0 %v392
    %933 = vmatpush.msra.mxu0 %v360
    %934 = vmatpush.msra.mxu0 %v328
    %935 = vmatpush.msra.mxu0 %v296
    %936 = vmatpush.msra.mxu0 %v264
    %937 = vmatpush.msra.mxu0 %v232
    %938 = vmatpush.msra.mxu0 %v200
    %939 = vmatpush.msra.mxu0 %v168
    %940 = vmatpush.msra.mxu0 %v136
    %941 = vmatpush.msra.mxu0 %v104
    %942 = vmatpush.msra.mxu0 %v72
    %943 = vmatpush.msra.mxu0 %v40
    %944 = vmatmul.f32.gmra.mxu0 %v23
    %v945 = vpop.f32.mrf.mxu0
    %v946 = vadd.f32 %v560, %v945
    %947 = vdwg.mxu0
    %948 = vmatpush.msra.mxu0 %v521
    %949 = vmatpush.msra.mxu0 %v489
    %950 = vmatpush.msra.mxu0 %v457
    %951 = vmatpush.msra.mxu0 %v425
    %952 = vmatpush.msra.mxu0 %v393
    %953 = vmatpush.msra.mxu0 %v361
    %954 = vmatpush.msra.mxu0 %v329
    %955 = vmatpush.msra.mxu0 %v297
    %956 = vmatpush.msra.mxu0 %v265
    %957 = vmatpush.msra.mxu0 %v233
    %958 = vmatpush.msra.mxu0 %v201
    %959 = vmatpush.msra.mxu0 %v169
    %960 = vmatpush.msra.mxu0 %v137
    %961 = vmatpush.msra.mxu0 %v105
    %962 = vmatpush.msra.mxu0 %v73
    %963 = vmatpush.msra.mxu0 %v41
    %964 = vmatmul.f32.gmra.mxu0 %v23
    %v965 = vpop.f32.mrf.mxu0
    %v966 = vadd.f32 %v561, %v965
    %967 = vdwg.mxu0
    %968 = vmatpush.msra.mxu0 %v522
    %969 = vmatpush.msra.mxu0 %v490
    %970 = vmatpush.msra.mxu0 %v458
    %971 = vmatpush.msra.mxu0 %v426
    %972 = vmatpush.msra.mxu0 %v394
    %973 = vmatpush.msra.mxu0 %v362
    %974 = vmatpush.msra.mxu0 %v330
    %975 = vmatpush.msra.mxu0 %v298
    %976 = vmatpush.msra.mxu0 %v266
    %977 = vmatpush.msra.mxu0 %v234
    %978 = vmatpush.msra.mxu0 %v202
    %979 = vmatpush.msra.mxu0 %v170
    %980 = vmatpush.msra.mxu0 %v138
    %981 = vmatpush.msra.mxu0 %v106
    %982 = vmatpush.msra.mxu0 %v74
    %983 = vmatpush.msra.mxu0 %v42
    %984 = vmatmul.f32.gmra.mxu0 %v23
    %v985 = vpop.f32.mrf.mxu0
    %v986 = vadd.f32 %v562, %v985
    %987 = vdwg.mxu0
    %988 = vmatpush.msra.mxu0 %v523
    %989 = vmatpush.msra.mxu0 %v491
    %990 = vmatpush.msra.mxu0 %v459
    %991 = vmatpush.msra.mxu0 %v427
    %992 = vmatpush.msra.mxu0 %v395
    %993 = vmatpush.msra.mxu0 %v363
    %994 = vmatpush.msra.mxu0 %v331
    %995 = vmatpush.msra.mxu0 %v299
    %996 = vmatpush.msra.mxu0 %v267
    %997 = vmatpush.msra.mxu0 %v235
    %998 = vmatpush.msra.mxu0 %v203
    %999 = vmatpush.msra.mxu0 %v171
    %1000 = vmatpush.msra.mxu0 %v139
    %1001 = vmatpush.msra.mxu0 %v107
    %1002 = vmatpush.msra.mxu0 %v75
    %1003 = vmatpush.msra.mxu0 %v43
    %1004 = vmatmul.f32.gmra.mxu0 %v23
    %v1005 = vpop.f32.mrf.mxu0
    %v1006 = vadd.f32 %v563, %v1005
    %1007 = vdwg.mxu0
    %1008 = vmatpush.msra.mxu0 %v524
    %1009 = vmatpush.msra.mxu0 %v492
    %1010 = vmatpush.msra.mxu0 %v460
    %1011 = vmatpush.msra.mxu0 %v428
    %1012 = vmatpush.msra.mxu0 %v396
    %1013 = vmatpush.msra.mxu0 %v364
    %1014 = vmatpush.msra.mxu0 %v332
    %1015 = vmatpush.msra.mxu0 %v300
    %1016 = vmatpush.msra.mxu0 %v268
    %1017 = vmatpush.msra.mxu0 %v236
    %1018 = vmatpush.msra.mxu0 %v204
    %1019 = vmatpush.msra.mxu0 %v172
    %1020 = vmatpush.msra.mxu0 %v140
    %1021 = vmatpush.msra.mxu0 %v108
    %1022 = vmatpush.msra.mxu0 %v76
    %1023 = vmatpush.msra.mxu0 %v44
    %1024 = vmatmul.f32.gmra.mxu0 %v23
    %v1025 = vpop.f32.mrf.mxu0
    %v1026 = vadd.f32 %v564, %v1025
    %1027 = vdwg.mxu0
    %1028 = vmatpush.msra.mxu0 %v525
    %1029 = vmatpush.msra.mxu0 %v493
    %1030 = vmatpush.msra.mxu0 %v461
    %1031 = vmatpush.msra.mxu0 %v429
    %1032 = vmatpush.msra.mxu0 %v397
    %1033 = vmatpush.msra.mxu0 %v365
    %1034 = vmatpush.msra.mxu0 %v333
    %1035 = vmatpush.msra.mxu0 %v301
    %1036 = vmatpush.msra.mxu0 %v269
    %1037 = vmatpush.msra.mxu0 %v237
    %1038 = vmatpush.msra.mxu0 %v205
    %1039 = vmatpush.msra.mxu0 %v173
    %1040 = vmatpush.msra.mxu0 %v141
    %1041 = vmatpush.msra.mxu0 %v109
    %1042 = vmatpush.msra.mxu0 %v77
    %1043 = vmatpush.msra.mxu0 %v45
    %1044 = vmatmul.f32.gmra.mxu0 %v23
    %v1045 = vpop.f32.mrf.mxu0
    %v1046 = vadd.f32 %v565, %v1045
    %1047 = vdwg.mxu0
    %1048 = vmatpush.msra.mxu0 %v526
    %1049 = vmatpush.msra.mxu0 %v494
    %1050 = vmatpush.msra.mxu0 %v462
    %1051 = vmatpush.msra.mxu0 %v430
    %1052 = vmatpush.msra.mxu0 %v398
    %1053 = vmatpush.msra.mxu0 %v366
    %1054 = vmatpush.msra.mxu0 %v334
    %1055 = vmatpush.msra.mxu0 %v302
    %1056 = vmatpush.msra.mxu0 %v270
    %1057 = vmatpush.msra.mxu0 %v238
    %1058 = vmatpush.msra.mxu0 %v206
    %1059 = vmatpush.msra.mxu0 %v174
    %1060 = vmatpush.msra.mxu0 %v142
    %1061 = vmatpush.msra.mxu0 %v110
    %1062 = vmatpush.msra.mxu0 %v78
    %1063 = vmatpush.msra.mxu0 %v46
    %1064 = vmatmul.f32.gmra.mxu0 %v23
    %v1065 = vpop.f32.mrf.mxu0
    %v1066 = vadd.f32 %v566, %v1065
    %1067 = vdwg.mxu0
    %1068 = vmatpush.msra.mxu0 %v527
    %1069 = vmatpush.msra.mxu0 %v495
    %1070 = vmatpush.msra.mxu0 %v463
    %1071 = vmatpush.msra.mxu0 %v431
    %1072 = vmatpush.msra.mxu0 %v399
    %1073 = vmatpush.msra.mxu0 %v367
    %1074 = vmatpush.msra.mxu0 %v335
    %1075 = vmatpush.msra.mxu0 %v303
    %1076 = vmatpush.msra.mxu0 %v271
    %1077 = vmatpush.msra.mxu0 %v239
    %1078 = vmatpush.msra.mxu0 %v207
    %1079 = vmatpush.msra.mxu0 %v175
    %1080 = vmatpush.msra.mxu0 %v143
    %1081 = vmatpush.msra.mxu0 %v111
    %1082 = vmatpush.msra.mxu0 %v79
    %1083 = vmatpush.msra.mxu0 %v47
    %1084 = vmatmul.f32.gmra.mxu0 %v23
    %v1085 = vpop.f32.mrf.mxu0
    %v1086 = vadd.f32 %v567, %v1085
    %1087 = vdwg.mxu0
    %1088 = vmatpush.msra.mxu0 %v528
    %1089 = vmatpush.msra.mxu0 %v496
    %1090 = vmatpush.msra.mxu0 %v464
    %1091 = vmatpush.msra.mxu0 %v432
    %1092 = vmatpush.msra.mxu0 %v400
    %1093 = vmatpush.msra.mxu0 %v368
    %1094 = vmatpush.msra.mxu0 %v336
    %1095 = vmatpush.msra.mxu0 %v304
    %1096 = vmatpush.msra.mxu0 %v272
    %1097 = vmatpush.msra.mxu0 %v240
    %1098 = vmatpush.msra.mxu0 %v208
    %1099 = vmatpush.msra.mxu0 %v176
    %1100 = vmatpush.msra.mxu0 %v144
    %1101 = vmatpush.msra.mxu0 %v112
    %1102 = vmatpush.msra.mxu0 %v80
    %1103 = vmatpush.msra.mxu0 %v48
    %1104 = vmatmul.f32.gmra.mxu0 %v23
    %v1105 = vpop.f32.mrf.mxu0
    %v1106 = vadd.f32 %v568, %v1105
    %1107 = vdwg.mxu0
    %1108 = vmatpush.msra.mxu0 %v529
    %1109 = vmatpush.msra.mxu0 %v497
    %1110 = vmatpush.msra.mxu0 %v465
    %1111 = vmatpush.msra.mxu0 %v433
    %1112 = vmatpush.msra.mxu0 %v401
    %1113 = vmatpush.msra.mxu0 %v369
    %1114 = vmatpush.msra.mxu0 %v337
    %1115 = vmatpush.msra.mxu0 %v305
    %1116 = vmatpush.msra.mxu0 %v273
    %1117 = vmatpush.msra.mxu0 %v241
    %1118 = vmatpush.msra.mxu0 %v209
    %1119 = vmatpush.msra.mxu0 %v177
    %1120 = vmatpush.msra.mxu0 %v145
    %1121 = vmatpush.msra.mxu0 %v113
    %1122 = vmatpush.msra.mxu0 %v81
    %1123 = vmatpush.msra.mxu0 %v49
    %1124 = vmatmul.f32.gmra.mxu0 %v23
    %v1125 = vpop.f32.mrf.mxu0
    %v1126 = vadd.f32 %v569, %v1125
    %1127 = vdwg.mxu0
    %1128 = vmatpush.msra.mxu0 %v530
    %1129 = vmatpush.msra.mxu0 %v498
    %1130 = vmatpush.msra.mxu0 %v466
    %1131 = vmatpush.msra.mxu0 %v434
    %1132 = vmatpush.msra.mxu0 %v402
    %1133 = vmatpush.msra.mxu0 %v370
    %1134 = vmatpush.msra.mxu0 %v338
    %1135 = vmatpush.msra.mxu0 %v306
    %1136 = vmatpush.msra.mxu0 %v274
    %1137 = vmatpush.msra.mxu0 %v242
    %1138 = vmatpush.msra.mxu0 %v210
    %1139 = vmatpush.msra.mxu0 %v178
    %1140 = vmatpush.msra.mxu0 %v146
    %1141 = vmatpush.msra.mxu0 %v114
    %1142 = vmatpush.msra.mxu0 %v82
    %1143 = vmatpush.msra.mxu0 %v50
    %1144 = vmatmul.f32.gmra.mxu0 %v23
    %v1145 = vpop.f32.mrf.mxu0
    %v1146 = vadd.f32 %v570, %v1145
    %1147 = vdwg.mxu0
    %1148 = vmatpush.msra.mxu0 %v531
    %1149 = vmatpush.msra.mxu0 %v499
    %1150 = vmatpush.msra.mxu0 %v467
    %1151 = vmatpush.msra.mxu0 %v435
    %1152 = vmatpush.msra.mxu0 %v403
    %1153 = vmatpush.msra.mxu0 %v371
    %1154 = vmatpush.msra.mxu0 %v339
    %1155 = vmatpush.msra.mxu0 %v307
    %1156 = vmatpush.msra.mxu0 %v275
    %1157 = vmatpush.msra.mxu0 %v243
    %1158 = vmatpush.msra.mxu0 %v211
    %1159 = vmatpush.msra.mxu0 %v179
    %1160 = vmatpush.msra.mxu0 %v147
    %1161 = vmatpush.msra.mxu0 %v115
    %1162 = vmatpush.msra.mxu0 %v83
    %1163 = vmatpush.msra.mxu0 %v51
    %1164 = vmatmul.f32.gmra.mxu0 %v23
    %v1165 = vpop.f32.mrf.mxu0
    %v1166 = vadd.f32 %v571, %v1165
    %1167 = vdwg.mxu0
    %1168 = vmatpush.msra.mxu0 %v532
    %1169 = vmatpush.msra.mxu0 %v500
    %1170 = vmatpush.msra.mxu0 %v468
    %1171 = vmatpush.msra.mxu0 %v436
    %1172 = vmatpush.msra.mxu0 %v404
    %1173 = vmatpush.msra.mxu0 %v372
    %1174 = vmatpush.msra.mxu0 %v340
    %1175 = vmatpush.msra.mxu0 %v308
    %1176 = vmatpush.msra.mxu0 %v276
    %1177 = vmatpush.msra.mxu0 %v244
    %1178 = vmatpush.msra.mxu0 %v212
    %1179 = vmatpush.msra.mxu0 %v180
    %1180 = vmatpush.msra.mxu0 %v148
    %1181 = vmatpush.msra.mxu0 %v116
    %1182 = vmatpush.msra.mxu0 %v84
    %1183 = vmatpush.msra.mxu0 %v52
    %1184 = vmatmul.f32.gmra.mxu0 %v23
    %v1185 = vpop.f32.mrf.mxu0
    %v1186 = vadd.f32 %v572, %v1185
    %1187 = vdwg.mxu0
    %1188 = vmatpush.msra.mxu0 %v533
    %1189 = vmatpush.msra.mxu0 %v501
    %1190 = vmatpush.msra.mxu0 %v469
    %1191 = vmatpush.msra.mxu0 %v437
    %1192 = vmatpush.msra.mxu0 %v405
    %1193 = vmatpush.msra.mxu0 %v373
    %1194 = vmatpush.msra.mxu0 %v341
    %1195 = vmatpush.msra.mxu0 %v309
    %1196 = vmatpush.msra.mxu0 %v277
    %1197 = vmatpush.msra.mxu0 %v245
    %1198 = vmatpush.msra.mxu0 %v213
    %1199 = vmatpush.msra.mxu0 %v181
    %1200 = vmatpush.msra.mxu0 %v149
    %1201 = vmatpush.msra.mxu0 %v117
    %1202 = vmatpush.msra.mxu0 %v85
    %1203 = vmatpush.msra.mxu0 %v53
    %1204 = vmatmul.f32.gmra.mxu0 %v23
    %v1205 = vpop.f32.mrf.mxu0
    %v1206 = vadd.f32 %v573, %v1205
    %1207 = vdwg.mxu0
    %1208 = vmatpush.msra.mxu0 %v534
    %1209 = vmatpush.msra.mxu0 %v502
    %1210 = vmatpush.msra.mxu0 %v470
    %1211 = vmatpush.msra.mxu0 %v438
    %1212 = vmatpush.msra.mxu0 %v406
    %1213 = vmatpush.msra.mxu0 %v374
    %1214 = vmatpush.msra.mxu0 %v342
    %1215 = vmatpush.msra.mxu0 %v310
    %1216 = vmatpush.msra.mxu0 %v278
    %1217 = vmatpush.msra.mxu0 %v246
    %1218 = vmatpush.msra.mxu0 %v214
    %1219 = vmatpush.msra.mxu0 %v182
    %1220 = vmatpush.msra.mxu0 %v150
    %1221 = vmatpush.msra.mxu0 %v118
    %1222 = vmatpush.msra.mxu0 %v86
    %1223 = vmatpush.msra.mxu0 %v54
    %1224 = vmatmul.f32.gmra.mxu0 %v23
    %v1225 = vpop.f32.mrf.mxu0
    %v1226 = vadd.f32 %v574, %v1225
    %1227 = vdwg.mxu0
    %1228 = vmatpush.msra.mxu0 %v535
    %1229 = vmatpush.msra.mxu0 %v503
    %1230 = vmatpush.msra.mxu0 %v471
    %1231 = vmatpush.msra.mxu0 %v439
    %1232 = vmatpush.msra.mxu0 %v407
    %1233 = vmatpush.msra.mxu0 %v375
    %1234 = vmatpush.msra.mxu0 %v343
    %1235 = vmatpush.msra.mxu0 %v311
    %1236 = vmatpush.msra.mxu0 %v279
    %1237 = vmatpush.msra.mxu0 %v247
    %1238 = vmatpush.msra.mxu0 %v215
    %1239 = vmatpush.msra.mxu0 %v183
    %1240 = vmatpush.msra.mxu0 %v151
    %1241 = vmatpush.msra.mxu0 %v119
    %1242 = vmatpush.msra.mxu0 %v87
    %1243 = vmatpush.msra.mxu0 %v55
    %1244 = vmatmul.f32.gmra.mxu0 %v23
    %v1245 = vpop.f32.mrf.mxu0
    %v1246 = vadd.f32 %v575, %v1245
    %1247 = vdwg.mxu0
    %v1248 = vmax.f32 %v626, 0.0
    %v1249 = vmax.f32 %v646, 0.0
    %v1250 = vmax.f32 %v666, 0.0
    %v1251 = vmax.f32 %v686, 0.0
    %v1252 = vmax.f32 %v706, 0.0
    %v1253 = vmax.f32 %v726, 0.0
    %v1254 = vmax.f32 %v746, 0.0
    %v1255 = vmax.f32 %v766, 0.0
    %v1256 = vmax.f32 %v786, 0.0
    %v1257 = vmax.f32 %v806, 0.0
    %v1258 = vmax.f32 %v826, 0.0
    %v1259 = vmax.f32 %v846, 0.0
    %v1260 = vmax.f32 %v866, 0.0
    %v1261 = vmax.f32 %v886, 0.0
    %v1262 = vmax.f32 %v906, 0.0
    %v1263 = vmax.f32 %v926, 0.0
    %v1264 = vmax.f32 %v946, 0.0
    %v1265 = vmax.f32 %v966, 0.0
    %v1266 = vmax.f32 %v986, 0.0
    %v1267 = vmax.f32 %v1006, 0.0
    %v1268 = vmax.f32 %v1026, 0.0
    %v1269 = vmax.f32 %v1046, 0.0
    %v1270 = vmax.f32 %v1066, 0.0
    %v1271 = vmax.f32 %v1086, 0.0
    %v1272 = vmax.f32 %v1106, 0.0
    %v1273 = vmax.f32 %v1126, 0.0
    %v1274 = vmax.f32 %v1146, 0.0
    %v1275 = vmax.f32 %v1166, 0.0
    %v1276 = vmax.f32 %v1186, 0.0
    %v1277 = vmax.f32 %v1206, 0.0
    %v1278 = vmax.f32 %v1226, 0.0
    %v1279 = vmax.f32 %v1246, 0.0
    %v1280 = vld [vmem:[%s3] sm:$0xff]
    %v1281 = vld [vmem:[%s3 + $0x8] sm:$0xff]
    %v1282 = vld [vmem:[%s3 + $0x10] sm:$0xff]
    %v1283 = vld [vmem:[%s3 + $0x18] sm:$0xff]
    %v1284 = vld [vmem:[%s3 + $0x20] sm:$0xff]
    %v1285 = vld [vmem:[%s3 + $0x28] sm:$0xff]
    %v1286 = vld [vmem:[%s3 + $0x30] sm:$0xff]
    %v1287 = vld [vmem:[%s3 + $0x38] sm:$0xff]
    %v1288 = vld [vmem:[%s3 + $0x40] sm:$0xff]
    %v1289 = vld [vmem:[%s3 + $0x48] sm:$0xff]
    %v1290 = vld [vmem:[%s3 + $0x50] sm:$0xff]
    %v1291 = vld [vmem:[%s3 + $0x58] sm:$0xff]
    %v1292 = vld [vmem:[%s3 + $0x60] sm:$0xff]
    %v1293 = vld [vmem:[%s3 + $0x68] sm:$0xff]
    %v1294 = vld [vmem:[%s3 + $0x70] sm:$0xff]
    %v1295 = vld [vmem:[%s3 + $0x78] sm:$0xff]
    %v1296 = vld [vmem:[%s3 + $0x80] sm:$0xff]
    %v1297 = vld [vmem:[%s3 + $0x88] sm:$0xff]
    %v1298 = vld [vmem:[%s3 + $0x90] sm:$0xff]
    %v1299 = vld [vmem:[%s3 + $0x98] sm:$0xff]
    %v1300 = vld [vmem:[%s3 + $0xa0] sm:$0xff]
    %v1301 = vld [vmem:[%s3 + $0xa8] sm:$0xff]
    %v1302 = vld [vmem:[%s3 + $0xb0] sm:$0xff]
    %v1303 = vld [vmem:[%s3 + $0xb8] sm:$0xff]
    %v1304 = vld [vmem:[%s3 + $0xc0] sm:$0xff]
    %v1305 = vld [vmem:[%s3 + $0xc8] sm:$0xff]
    %v1306 = vld [vmem:[%s3 + $0xd0] sm:$0xff]
    %v1307 = vld [vmem:[%s3 + $0xd8] sm:$0xff]
    %v1308 = vld [vmem:[%s3 + $0xe0] sm:$0xff]
    %v1309 = vld [vmem:[%s3 + $0xe8] sm:$0xff]
    %v1310 = vld [vmem:[%s3 + $0xf0] sm:$0xff]
    %v1311 = vld [vmem:[%s3 + $0xf8] sm:$0xff]
    %v1312 = vld [vmem:[%s3 + $0x100] sm:$0xff]
    %v1313 = vld [vmem:[%s3 + $0x108] sm:$0xff]
    %v1314 = vld [vmem:[%s3 + $0x110] sm:$0xff]
    %v1315 = vld [vmem:[%s3 + $0x118] sm:$0xff]
    %v1316 = vld [vmem:[%s3 + $0x120] sm:$0xff]
    %v1317 = vld [vmem:[%s3 + $0x128] sm:$0xff]
    %v1318 = vld [vmem:[%s3 + $0x130] sm:$0xff]
    %v1319 = vld [vmem:[%s3 + $0x138] sm:$0xff]
    %v1320 = vld [vmem:[%s3 + $0x140] sm:$0xff]
    %v1321 = vld [vmem:[%s3 + $0x148] sm:$0xff]
    %v1322 = vld [vmem:[%s3 + $0x150] sm:$0xff]
    %v1323 = vld [vmem:[%s3 + $0x158] sm:$0xff]
    %v1324 = vld [vmem:[%s3 + $0x160] sm:$0xff]
    %v1325 = vld [vmem:[%s3 + $0x168] sm:$0xff]
    %v1326 = vld [vmem:[%s3 + $0x170] sm:$0xff]
    %v1327 = vld [vmem:[%s3 + $0x178] sm:$0xff]
    %v1328 = vld [vmem:[%s3 + $0x180] sm:$0xff]
    %v1329 = vld [vmem:[%s3 + $0x188] sm:$0xff]
    %v1330 = vld [vmem:[%s3 + $0x190] sm:$0xff]
    %v1331 = vld [vmem:[%s3 + $0x198] sm:$0xff]
    %v1332 = vld [vmem:[%s3 + $0x1a0] sm:$0xff]
    %v1333 = vld [vmem:[%s3 + $0x1a8] sm:$0xff]
    %v1334 = vld [vmem:[%s3 + $0x1b0] sm:$0xff]
    %v1335 = vld [vmem:[%s3 + $0x1b8] sm:$0xff]
    %v1336 = vld [vmem:[%s3 + $0x1c0] sm:$0xff]
    %v1337 = vld [vmem:[%s3 + $0x1c8] sm:$0xff]
    %v1338 = vld [vmem:[%s3 + $0x1d0] sm:$0xff]
    %v1339 = vld [vmem:[%s3 + $0x1d8] sm:$0xff]
    %v1340 = vld [vmem:[%s3 + $0x1e0] sm:$0xff]
    %v1341 = vld [vmem:[%s3 + $0x1e8] sm:$0xff]
    %v1342 = vld [vmem:[%s3 + $0x1f0] sm:$0xff]
    %v1343 = vld [vmem:[%s3 + $0x1f8] sm:$0xff]
    %v1344 = vld [vmem:[%s3 + $0x200] sm:$0xff]
    %v1345 = vld [vmem:[%s3 + $0x208] sm:$0xff]
    %v1346 = vld [vmem:[%s3 + $0x210] sm:$0xff]
    %v1347 = vld [vmem:[%s3 + $0x218] sm:$0xff]
    %v1348 = vld [vmem:[%s3 + $0x220] sm:$0xff]
    %v1349 = vld [vmem:[%s3 + $0x228] sm:$0xff]
    %v1350 = vld [vmem:[%s3 + $0x230] sm:$0xff]
    %v1351 = vld [vmem:[%s3 + $0x238] sm:$0xff]
    %v1352 = vld [vmem:[%s3 + $0x240] sm:$0xff]
    %v1353 = vld [vmem:[%s3 + $0x248] sm:$0xff]
    %v1354 = vld [vmem:[%s3 + $0x250] sm:$0xff]
    %v1355 = vld [vmem:[%s3 + $0x258] sm:$0xff]
    %v1356 = vld [vmem:[%s3 + $0x260] sm:$0xff]
    %v1357 = vld [vmem:[%s3 + $0x268] sm:$0xff]
    %v1358 = vld [vmem:[%s3 + $0x270] sm:$0xff]
    %v1359 = vld [vmem:[%s3 + $0x278] sm:$0xff]
    %v1360 = vld [vmem:[%s3 + $0x280] sm:$0xff]
    %v1361 = vld [vmem:[%s3 + $0x288] sm:$0xff]
    %v1362 = vld [vmem:[%s3 + $0x290] sm:$0xff]
    %v1363 = vld [vmem:[%s3 + $0x298] sm:$0xff]
    %v1364 = vld [vmem:[%s3 + $0x2a0] sm:$0xff]
    %v1365 = vld [vmem:[%s3 + $0x2a8] sm:$0xff]
    %v1366 = vld [vmem:[%s3 + $0x2b0] sm:$0xff]
    %v1367 = vld [vmem:[%s3 + $0x2b8] sm:$0xff]
    %v1368 = vld [vmem:[%s3 + $0x2c0] sm:$0xff]
    %v1369 = vld [vmem:[%s3 + $0x2c8] sm:$0xff]
    %v1370 = vld [vmem:[%s3 + $0x2d0] sm:$0xff]
    %v1371 = vld [vmem:[%s3 + $0x2d8] sm:$0xff]
    %v1372 = vld [vmem:[%s3 + $0x2e0] sm:$0xff]
    %v1373 = vld [vmem:[%s3 + $0x2e8] sm:$0xff]
    %v1374 = vld [vmem:[%s3 + $0x2f0] sm:$0xff]
    %v1375 = vld [vmem:[%s3 + $0x2f8] sm:$0xff]
    %v1376 = vld [vmem:[%s3 + $0x300] sm:$0xff]
    %v1377 = vld [vmem:[%s3 + $0x308] sm:$0xff]
    %v1378 = vld [vmem:[%s3 + $0x310] sm:$0xff]
    %v1379 = vld [vmem:[%s3 + $0x318] sm:$0xff]
    %v1380 = vld [vmem:[%s3 + $0x320] sm:$0xff]
    %v1381 = vld [vmem:[%s3 + $0x328] sm:$0xff]
    %v1382 = vld [vmem:[%s3 + $0x330] sm:$0xff]
    %v1383 = vld [vmem:[%s3 + $0x338] sm:$0xff]
    %v1384 = vld [vmem:[%s3 + $0x340] sm:$0xff]
    %v1385 = vld [vmem:[%s3 + $0x348] sm:$0xff]
    %v1386 = vld [vmem:[%s3 + $0x350] sm:$0xff]
    %v1387 = vld [vmem:[%s3 + $0x358] sm:$0xff]
    %v1388 = vld [vmem:[%s3 + $0x360] sm:$0xff]
    %v1389 = vld [vmem:[%s3 + $0x368] sm:$0xff]
    %v1390 = vld [vmem:[%s3 + $0x370] sm:$0xff]
    %v1391 = vld [vmem:[%s3 + $0x378] sm:$0xff]
    %v1392 = vld [vmem:[%s3 + $0x380] sm:$0xff]
    %v1393 = vld [vmem:[%s3 + $0x388] sm:$0xff]
    %v1394 = vld [vmem:[%s3 + $0x390] sm:$0xff]
    %v1395 = vld [vmem:[%s3 + $0x398] sm:$0xff]
    %v1396 = vld [vmem:[%s3 + $0x3a0] sm:$0xff]
    %v1397 = vld [vmem:[%s3 + $0x3a8] sm:$0xff]
    %v1398 = vld [vmem:[%s3 + $0x3b0] sm:$0xff]
    %v1399 = vld [vmem:[%s3 + $0x3b8] sm:$0xff]
    %v1400 = vld [vmem:[%s3 + $0x3c0] sm:$0xff]
    %v1401 = vld [vmem:[%s3 + $0x3c8] sm:$0xff]
    %v1402 = vld [vmem:[%s3 + $0x3d0] sm:$0xff]
    %v1403 = vld [vmem:[%s3 + $0x3d8] sm:$0xff]
    %v1404 = vld [vmem:[%s3 + $0x3e0] sm:$0xff]
    %v1405 = vld [vmem:[%s3 + $0x3e8] sm:$0xff]
    %v1406 = vld [vmem:[%s3 + $0x3f0] sm:$0xff]
    %v1407 = vld [vmem:[%s3 + $0x3f8] sm:$0xff]
    %v1408 = vld [vmem:[%s3 + $0x400] sm:$0xff]
    %v1409 = vld [vmem:[%s3 + $0x408] sm:$0xff]
    %v1410 = vld [vmem:[%s3 + $0x410] sm:$0xff]
    %v1411 = vld [vmem:[%s3 + $0x418] sm:$0xff]
    %v1412 = vld [vmem:[%s3 + $0x420] sm:$0xff]
    %v1413 = vld [vmem:[%s3 + $0x428] sm:$0xff]
    %v1414 = vld [vmem:[%s3 + $0x430] sm:$0xff]
    %v1415 = vld [vmem:[%s3 + $0x438] sm:$0xff]
    %v1416 = vld [vmem:[%s3 + $0x440] sm:$0xff]
    %v1417 = vld [vmem:[%s3 + $0x448] sm:$0xff]
    %v1418 = vld [vmem:[%s3 + $0x450] sm:$0xff]
    %v1419 = vld [vmem:[%s3 + $0x458] sm:$0xff]
    %v1420 = vld [vmem:[%s3 + $0x460] sm:$0xff]
    %v1421 = vld [vmem:[%s3 + $0x468] sm:$0xff]
    %v1422 = vld [vmem:[%s3 + $0x470] sm:$0xff]
    %v1423 = vld [vmem:[%s3 + $0x478] sm:$0xff]
    %v1424 = vld [vmem:[%s3 + $0x480] sm:$0xff]
    %v1425 = vld [vmem:[%s3 + $0x488] sm:$0xff]
    %v1426 = vld [vmem:[%s3 + $0x490] sm:$0xff]
    %v1427 = vld [vmem:[%s3 + $0x498] sm:$0xff]
    %v1428 = vld [vmem:[%s3 + $0x4a0] sm:$0xff]
    %v1429 = vld [vmem:[%s3 + $0x4a8] sm:$0xff]
    %v1430 = vld [vmem:[%s3 + $0x4b0] sm:$0xff]
    %v1431 = vld [vmem:[%s3 + $0x4b8] sm:$0xff]
    %v1432 = vld [vmem:[%s3 + $0x4c0] sm:$0xff]
    %v1433 = vld [vmem:[%s3 + $0x4c8] sm:$0xff]
    %v1434 = vld [vmem:[%s3 + $0x4d0] sm:$0xff]
    %v1435 = vld [vmem:[%s3 + $0x4d8] sm:$0xff]
    %v1436 = vld [vmem:[%s3 + $0x4e0] sm:$0xff]
    %v1437 = vld [vmem:[%s3 + $0x4e8] sm:$0xff]
    %v1438 = vld [vmem:[%s3 + $0x4f0] sm:$0xff]
    %v1439 = vld [vmem:[%s3 + $0x4f8] sm:$0xff]
    %v1440 = vld [vmem:[%s3 + $0x500] sm:$0xff]
    %v1441 = vld [vmem:[%s3 + $0x508] sm:$0xff]
    %v1442 = vld [vmem:[%s3 + $0x510] sm:$0xff]
    %v1443 = vld [vmem:[%s3 + $0x518] sm:$0xff]
    %v1444 = vld [vmem:[%s3 + $0x520] sm:$0xff]
    %v1445 = vld [vmem:[%s3 + $0x528] sm:$0xff]
    %v1446 = vld [vmem:[%s3 + $0x530] sm:$0xff]
    %v1447 = vld [vmem:[%s3 + $0x538] sm:$0xff]
    %v1448 = vld [vmem:[%s3 + $0x540] sm:$0xff]
    %v1449 = vld [vmem:[%s3 + $0x548] sm:$0xff]
    %v1450 = vld [vmem:[%s3 + $0x550] sm:$0xff]
    %v1451 = vld [vmem:[%s3 + $0x558] sm:$0xff]
    %v1452 = vld [vmem:[%s3 + $0x560] sm:$0xff]
    %v1453 = vld [vmem:[%s3 + $0x568] sm:$0xff]
    %v1454 = vld [vmem:[%s3 + $0x570] sm:$0xff]
    %v1455 = vld [vmem:[%s3 + $0x578] sm:$0xff]
    %v1456 = vld [vmem:[%s3 + $0x580] sm:$0xff]
    %v1457 = vld [vmem:[%s3 + $0x588] sm:$0xff]
    %v1458 = vld [vmem:[%s3 + $0x590] sm:$0xff]
    %v1459 = vld [vmem:[%s3 + $0x598] sm:$0xff]
    %v1460 = vld [vmem:[%s3 + $0x5a0] sm:$0xff]
    %v1461 = vld [vmem:[%s3 + $0x5a8] sm:$0xff]
    %v1462 = vld [vmem:[%s3 + $0x5b0] sm:$0xff]
    %v1463 = vld [vmem:[%s3 + $0x5b8] sm:$0xff]
    %v1464 = vld [vmem:[%s3 + $0x5c0] sm:$0xff]
    %v1465 = vld [vmem:[%s3 + $0x5c8] sm:$0xff]
    %v1466 = vld [vmem:[%s3 + $0x5d0] sm:$0xff]
    %v1467 = vld [vmem:[%s3 + $0x5d8] sm:$0xff]
    %v1468 = vld [vmem:[%s3 + $0x5e0] sm:$0xff]
    %v1469 = vld [vmem:[%s3 + $0x5e8] sm:$0xff]
    %v1470 = vld [vmem:[%s3 + $0x5f0] sm:$0xff]
    %v1471 = vld [vmem:[%s3 + $0x5f8] sm:$0xff]
    %v1472 = vld [vmem:[%s3 + $0x600] sm:$0xff]
    %v1473 = vld [vmem:[%s3 + $0x608] sm:$0xff]
    %v1474 = vld [vmem:[%s3 + $0x610] sm:$0xff]
    %v1475 = vld [vmem:[%s3 + $0x618] sm:$0xff]
    %v1476 = vld [vmem:[%s3 + $0x620] sm:$0xff]
    %v1477 = vld [vmem:[%s3 + $0x628] sm:$0xff]
    %v1478 = vld [vmem:[%s3 + $0x630] sm:$0xff]
    %v1479 = vld [vmem:[%s3 + $0x638] sm:$0xff]
    %v1480 = vld [vmem:[%s3 + $0x640] sm:$0xff]
    %v1481 = vld [vmem:[%s3 + $0x648] sm:$0xff]
    %v1482 = vld [vmem:[%s3 + $0x650] sm:$0xff]
    %v1483 = vld [vmem:[%s3 + $0x658] sm:$0xff]
    %v1484 = vld [vmem:[%s3 + $0x660] sm:$0xff]
    %v1485 = vld [vmem:[%s3 + $0x668] sm:$0xff]
    %v1486 = vld [vmem:[%s3 + $0x670] sm:$0xff]
    %v1487 = vld [vmem:[%s3 + $0x678] sm:$0xff]
    %v1488 = vld [vmem:[%s3 + $0x680] sm:$0xff]
    %v1489 = vld [vmem:[%s3 + $0x688] sm:$0xff]
    %v1490 = vld [vmem:[%s3 + $0x690] sm:$0xff]
    %v1491 = vld [vmem:[%s3 + $0x698] sm:$0xff]
    %v1492 = vld [vmem:[%s3 + $0x6a0] sm:$0xff]
    %v1493 = vld [vmem:[%s3 + $0x6a8] sm:$0xff]
    %v1494 = vld [vmem:[%s3 + $0x6b0] sm:$0xff]
    %v1495 = vld [vmem:[%s3 + $0x6b8] sm:$0xff]
    %v1496 = vld [vmem:[%s3 + $0x6c0] sm:$0xff]
    %v1497 = vld [vmem:[%s3 + $0x6c8] sm:$0xff]
    %v1498 = vld [vmem:[%s3 + $0x6d0] sm:$0xff]
    %v1499 = vld [vmem:[%s3 + $0x6d8] sm:$0xff]
    %v1500 = vld [vmem:[%s3 + $0x6e0] sm:$0xff]
    %v1501 = vld [vmem:[%s3 + $0x6e8] sm:$0xff]
    %v1502 = vld [vmem:[%s3 + $0x6f0] sm:$0xff]
    %v1503 = vld [vmem:[%s3 + $0x6f8] sm:$0xff]
    %v1504 = vld [vmem:[%s3 + $0x700] sm:$0xff]
    %v1505 = vld [vmem:[%s3 + $0x708] sm:$0xff]
    %v1506 = vld [vmem:[%s3 + $0x710] sm:$0xff]
    %v1507 = vld [vmem:[%s3 + $0x718] sm:$0xff]
    %v1508 = vld [vmem:[%s3 + $0x720] sm:$0xff]
    %v1509 = vld [vmem:[%s3 + $0x728] sm:$0xff]
    %v1510 = vld [vmem:[%s3 + $0x730] sm:$0xff]
    %v1511 = vld [vmem:[%s3 + $0x738] sm:$0xff]
    %v1512 = vld [vmem:[%s3 + $0x740] sm:$0xff]
    %v1513 = vld [vmem:[%s3 + $0x748] sm:$0xff]
    %v1514 = vld [vmem:[%s3 + $0x750] sm:$0xff]
    %v1515 = vld [vmem:[%s3 + $0x758] sm:$0xff]
    %v1516 = vld [vmem:[%s3 + $0x760] sm:$0xff]
    %v1517 = vld [vmem:[%s3 + $0x768] sm:$0xff]
    %v1518 = vld [vmem:[%s3 + $0x770] sm:$0xff]
    %v1519 = vld [vmem:[%s3 + $0x778] sm:$0xff]
    %v1520 = vld [vmem:[%s3 + $0x780] sm:$0xff]
    %v1521 = vld [vmem:[%s3 + $0x788] sm:$0xff]
    %v1522 = vld [vmem:[%s3 + $0x790] sm:$0xff]
    %v1523 = vld [vmem:[%s3 + $0x798] sm:$0xff]
    %v1524 = vld [vmem:[%s3 + $0x7a0] sm:$0xff]
    %v1525 = vld [vmem:[%s3 + $0x7a8] sm:$0xff]
    %v1526 = vld [vmem:[%s3 + $0x7b0] sm:$0xff]
    %v1527 = vld [vmem:[%s3 + $0x7b8] sm:$0xff]
    %v1528 = vld [vmem:[%s3 + $0x7c0] sm:$0xff]
    %v1529 = vld [vmem:[%s3 + $0x7c8] sm:$0xff]
    %v1530 = vld [vmem:[%s3 + $0x7d0] sm:$0xff]
    %v1531 = vld [vmem:[%s3 + $0x7d8] sm:$0xff]
    %v1532 = vld [vmem:[%s3 + $0x7e0] sm:$0xff]
    %v1533 = vld [vmem:[%s3 + $0x7e8] sm:$0xff]
    %v1534 = vld [vmem:[%s3 + $0x7f0] sm:$0xff]
    %v1535 = vld [vmem:[%s3 + $0x7f8] sm:$0xff]
    %v1536 = vld [vmem:[%s3 + $0x800] sm:$0xff]
    %v1537 = vld [vmem:[%s3 + $0x808] sm:$0xff]
    %v1538 = vld [vmem:[%s3 + $0x810] sm:$0xff]
    %v1539 = vld [vmem:[%s3 + $0x818] sm:$0xff]
    %v1540 = vld [vmem:[%s3 + $0x820] sm:$0xff]
    %v1541 = vld [vmem:[%s3 + $0x828] sm:$0xff]
    %v1542 = vld [vmem:[%s3 + $0x830] sm:$0xff]
    %v1543 = vld [vmem:[%s3 + $0x838] sm:$0xff]
    %v1544 = vld [vmem:[%s3 + $0x840] sm:$0xff]
    %v1545 = vld [vmem:[%s3 + $0x848] sm:$0xff]
    %v1546 = vld [vmem:[%s3 + $0x850] sm:$0xff]
    %v1547 = vld [vmem:[%s3 + $0x858] sm:$0xff]
    %v1548 = vld [vmem:[%s3 + $0x860] sm:$0xff]
    %v1549 = vld [vmem:[%s3 + $0x868] sm:$0xff]
    %v1550 = vld [vmem:[%s3 + $0x870] sm:$0xff]
    %v1551 = vld [vmem:[%s3 + $0x878] sm:$0xff]
    %v1552 = vld [vmem:[%s3 + $0x880] sm:$0xff]
    %v1553 = vld [vmem:[%s3 + $0x888] sm:$0xff]
    %v1554 = vld [vmem:[%s3 + $0x890] sm:$0xff]
    %v1555 = vld [vmem:[%s3 + $0x898] sm:$0xff]
    %v1556 = vld [vmem:[%s3 + $0x8a0] sm:$0xff]
    %v1557 = vld [vmem:[%s3 + $0x8a8] sm:$0xff]
    %v1558 = vld [vmem:[%s3 + $0x8b0] sm:$0xff]
    %v1559 = vld [vmem:[%s3 + $0x8b8] sm:$0xff]
    %v1560 = vld [vmem:[%s3 + $0x8c0] sm:$0xff]
    %v1561 = vld [vmem:[%s3 + $0x8c8] sm:$0xff]
    %v1562 = vld [vmem:[%s3 + $0x8d0] sm:$0xff]
    %v1563 = vld [vmem:[%s3 + $0x8d8] sm:$0xff]
    %v1564 = vld [vmem:[%s3 + $0x8e0] sm:$0xff]
    %v1565 = vld [vmem:[%s3 + $0x8e8] sm:$0xff]
    %v1566 = vld [vmem:[%s3 + $0x8f0] sm:$0xff]
    %v1567 = vld [vmem:[%s3 + $0x8f8] sm:$0xff]
    %v1568 = vld [vmem:[%s3 + $0x900] sm:$0xff]
    %v1569 = vld [vmem:[%s3 + $0x908] sm:$0xff]
    %v1570 = vld [vmem:[%s3 + $0x910] sm:$0xff]
    %v1571 = vld [vmem:[%s3 + $0x918] sm:$0xff]
    %v1572 = vld [vmem:[%s3 + $0x920] sm:$0xff]
    %v1573 = vld [vmem:[%s3 + $0x928] sm:$0xff]
    %v1574 = vld [vmem:[%s3 + $0x930] sm:$0xff]
    %v1575 = vld [vmem:[%s3 + $0x938] sm:$0xff]
    %v1576 = vld [vmem:[%s3 + $0x940] sm:$0xff]
    %v1577 = vld [vmem:[%s3 + $0x948] sm:$0xff]
    %v1578 = vld [vmem:[%s3 + $0x950] sm:$0xff]
    %v1579 = vld [vmem:[%s3 + $0x958] sm:$0xff]
    %v1580 = vld [vmem:[%s3 + $0x960] sm:$0xff]
    %v1581 = vld [vmem:[%s3 + $0x968] sm:$0xff]
    %v1582 = vld [vmem:[%s3 + $0x970] sm:$0xff]
    %v1583 = vld [vmem:[%s3 + $0x978] sm:$0xff]
    %v1584 = vld [vmem:[%s3 + $0x980] sm:$0xff]
    %v1585 = vld [vmem:[%s3 + $0x988] sm:$0xff]
    %v1586 = vld [vmem:[%s3 + $0x990] sm:$0xff]
    %v1587 = vld [vmem:[%s3 + $0x998] sm:$0xff]
    %v1588 = vld [vmem:[%s3 + $0x9a0] sm:$0xff]
    %v1589 = vld [vmem:[%s3 + $0x9a8] sm:$0xff]
    %v1590 = vld [vmem:[%s3 + $0x9b0] sm:$0xff]
    %v1591 = vld [vmem:[%s3 + $0x9b8] sm:$0xff]
    %v1592 = vld [vmem:[%s3 + $0x9c0] sm:$0xff]
    %v1593 = vld [vmem:[%s3 + $0x9c8] sm:$0xff]
    %v1594 = vld [vmem:[%s3 + $0x9d0] sm:$0xff]
    %v1595 = vld [vmem:[%s3 + $0x9d8] sm:$0xff]
    %v1596 = vld [vmem:[%s3 + $0x9e0] sm:$0xff]
    %v1597 = vld [vmem:[%s3 + $0x9e8] sm:$0xff]
    %v1598 = vld [vmem:[%s3 + $0x9f0] sm:$0xff]
    %v1599 = vld [vmem:[%s3 + $0x9f8] sm:$0xff]
    %v1600 = vld [vmem:[%s3 + $0xa00] sm:$0xff]
    %v1601 = vld [vmem:[%s3 + $0xa08] sm:$0xff]
    %v1602 = vld [vmem:[%s3 + $0xa10] sm:$0xff]
    %v1603 = vld [vmem:[%s3 + $0xa18] sm:$0xff]
    %v1604 = vld [vmem:[%s3 + $0xa20] sm:$0xff]
    %v1605 = vld [vmem:[%s3 + $0xa28] sm:$0xff]
    %v1606 = vld [vmem:[%s3 + $0xa30] sm:$0xff]
    %v1607 = vld [vmem:[%s3 + $0xa38] sm:$0xff]
    %v1608 = vld [vmem:[%s3 + $0xa40] sm:$0xff]
    %v1609 = vld [vmem:[%s3 + $0xa48] sm:$0xff]
    %v1610 = vld [vmem:[%s3 + $0xa50] sm:$0xff]
    %v1611 = vld [vmem:[%s3 + $0xa58] sm:$0xff]
    %v1612 = vld [vmem:[%s3 + $0xa60] sm:$0xff]
    %v1613 = vld [vmem:[%s3 + $0xa68] sm:$0xff]
    %v1614 = vld [vmem:[%s3 + $0xa70] sm:$0xff]
    %v1615 = vld [vmem:[%s3 + $0xa78] sm:$0xff]
    %v1616 = vld [vmem:[%s3 + $0xa80] sm:$0xff]
    %v1617 = vld [vmem:[%s3 + $0xa88] sm:$0xff]
    %v1618 = vld [vmem:[%s3 + $0xa90] sm:$0xff]
    %v1619 = vld [vmem:[%s3 + $0xa98] sm:$0xff]
    %v1620 = vld [vmem:[%s3 + $0xaa0] sm:$0xff]
    %v1621 = vld [vmem:[%s3 + $0xaa8] sm:$0xff]
    %v1622 = vld [vmem:[%s3 + $0xab0] sm:$0xff]
    %v1623 = vld [vmem:[%s3 + $0xab8] sm:$0xff]
    %v1624 = vld [vmem:[%s3 + $0xac0] sm:$0xff]
    %v1625 = vld [vmem:[%s3 + $0xac8] sm:$0xff]
    %v1626 = vld [vmem:[%s3 + $0xad0] sm:$0xff]
    %v1627 = vld [vmem:[%s3 + $0xad8] sm:$0xff]
    %v1628 = vld [vmem:[%s3 + $0xae0] sm:$0xff]
    %v1629 = vld [vmem:[%s3 + $0xae8] sm:$0xff]
    %v1630 = vld [vmem:[%s3 + $0xaf0] sm:$0xff]
    %v1631 = vld [vmem:[%s3 + $0xaf8] sm:$0xff]
    %v1632 = vld [vmem:[%s3 + $0xb00] sm:$0xff]
    %v1633 = vld [vmem:[%s3 + $0xb08] sm:$0xff]
    %v1634 = vld [vmem:[%s3 + $0xb10] sm:$0xff]
    %v1635 = vld [vmem:[%s3 + $0xb18] sm:$0xff]
    %v1636 = vld [vmem:[%s3 + $0xb20] sm:$0xff]
    %v1637 = vld [vmem:[%s3 + $0xb28] sm:$0xff]
    %v1638 = vld [vmem:[%s3 + $0xb30] sm:$0xff]
    %v1639 = vld [vmem:[%s3 + $0xb38] sm:$0xff]
    %v1640 = vld [vmem:[%s3 + $0xb40] sm:$0xff]
    %v1641 = vld [vmem:[%s3 + $0xb48] sm:$0xff]
    %v1642 = vld [vmem:[%s3 + $0xb50] sm:$0xff]
    %v1643 = vld [vmem:[%s3 + $0xb58] sm:$0xff]
    %v1644 = vld [vmem:[%s3 + $0xb60] sm:$0xff]
    %v1645 = vld [vmem:[%s3 + $0xb68] sm:$0xff]
    %v1646 = vld [vmem:[%s3 + $0xb70] sm:$0xff]
    %v1647 = vld [vmem:[%s3 + $0xb78] sm:$0xff]
    %v1648 = vld [vmem:[%s3 + $0xb80] sm:$0xff]
    %v1649 = vld [vmem:[%s3 + $0xb88] sm:$0xff]
    %v1650 = vld [vmem:[%s3 + $0xb90] sm:$0xff]
    %v1651 = vld [vmem:[%s3 + $0xb98] sm:$0xff]
    %v1652 = vld [vmem:[%s3 + $0xba0] sm:$0xff]
    %v1653 = vld [vmem:[%s3 + $0xba8] sm:$0xff]
    %v1654 = vld [vmem:[%s3 + $0xbb0] sm:$0xff]
    %v1655 = vld [vmem:[%s3 + $0xbb8] sm:$0xff]
    %v1656 = vld [vmem:[%s3 + $0xbc0] sm:$0xff]
    %v1657 = vld [vmem:[%s3 + $0xbc8] sm:$0xff]
    %v1658 = vld [vmem:[%s3 + $0xbd0] sm:$0xff]
    %v1659 = vld [vmem:[%s3 + $0xbd8] sm:$0xff]
    %v1660 = vld [vmem:[%s3 + $0xbe0] sm:$0xff]
    %v1661 = vld [vmem:[%s3 + $0xbe8] sm:$0xff]
    %v1662 = vld [vmem:[%s3 + $0xbf0] sm:$0xff]
    %v1663 = vld [vmem:[%s3 + $0xbf8] sm:$0xff]
    %v1664 = vld [vmem:[%s3 + $0xc00] sm:$0xff]
    %v1665 = vld [vmem:[%s3 + $0xc08] sm:$0xff]
    %v1666 = vld [vmem:[%s3 + $0xc10] sm:$0xff]
    %v1667 = vld [vmem:[%s3 + $0xc18] sm:$0xff]
    %v1668 = vld [vmem:[%s3 + $0xc20] sm:$0xff]
    %v1669 = vld [vmem:[%s3 + $0xc28] sm:$0xff]
    %v1670 = vld [vmem:[%s3 + $0xc30] sm:$0xff]
    %v1671 = vld [vmem:[%s3 + $0xc38] sm:$0xff]
    %v1672 = vld [vmem:[%s3 + $0xc40] sm:$0xff]
    %v1673 = vld [vmem:[%s3 + $0xc48] sm:$0xff]
    %v1674 = vld [vmem:[%s3 + $0xc50] sm:$0xff]
    %v1675 = vld [vmem:[%s3 + $0xc58] sm:$0xff]
    %v1676 = vld [vmem:[%s3 + $0xc60] sm:$0xff]
    %v1677 = vld [vmem:[%s3 + $0xc68] sm:$0xff]
    %v1678 = vld [vmem:[%s3 + $0xc70] sm:$0xff]
    %v1679 = vld [vmem:[%s3 + $0xc78] sm:$0xff]
    %v1680 = vld [vmem:[%s3 + $0xc80] sm:$0xff]
    %v1681 = vld [vmem:[%s3 + $0xc88] sm:$0xff]
    %v1682 = vld [vmem:[%s3 + $0xc90] sm:$0xff]
    %v1683 = vld [vmem:[%s3 + $0xc98] sm:$0xff]
    %v1684 = vld [vmem:[%s3 + $0xca0] sm:$0xff]
    %v1685 = vld [vmem:[%s3 + $0xca8] sm:$0xff]
    %v1686 = vld [vmem:[%s3 + $0xcb0] sm:$0xff]
    %v1687 = vld [vmem:[%s3 + $0xcb8] sm:$0xff]
    %v1688 = vld [vmem:[%s3 + $0xcc0] sm:$0xff]
    %v1689 = vld [vmem:[%s3 + $0xcc8] sm:$0xff]
    %v1690 = vld [vmem:[%s3 + $0xcd0] sm:$0xff]
    %v1691 = vld [vmem:[%s3 + $0xcd8] sm:$0xff]
    %v1692 = vld [vmem:[%s3 + $0xce0] sm:$0xff]
    %v1693 = vld [vmem:[%s3 + $0xce8] sm:$0xff]
    %v1694 = vld [vmem:[%s3 + $0xcf0] sm:$0xff]
    %v1695 = vld [vmem:[%s3 + $0xcf8] sm:$0xff]
    %v1696 = vld [vmem:[%s3 + $0xd00] sm:$0xff]
    %v1697 = vld [vmem:[%s3 + $0xd08] sm:$0xff]
    %v1698 = vld [vmem:[%s3 + $0xd10] sm:$0xff]
    %v1699 = vld [vmem:[%s3 + $0xd18] sm:$0xff]
    %v1700 = vld [vmem:[%s3 + $0xd20] sm:$0xff]
    %v1701 = vld [vmem:[%s3 + $0xd28] sm:$0xff]
    %v1702 = vld [vmem:[%s3 + $0xd30] sm:$0xff]
    %v1703 = vld [vmem:[%s3 + $0xd38] sm:$0xff]
    %v1704 = vld [vmem:[%s3 + $0xd40] sm:$0xff]
    %v1705 = vld [vmem:[%s3 + $0xd48] sm:$0xff]
    %v1706 = vld [vmem:[%s3 + $0xd50] sm:$0xff]
    %v1707 = vld [vmem:[%s3 + $0xd58] sm:$0xff]
    %v1708 = vld [vmem:[%s3 + $0xd60] sm:$0xff]
    %v1709 = vld [vmem:[%s3 + $0xd68] sm:$0xff]
    %v1710 = vld [vmem:[%s3 + $0xd70] sm:$0xff]
    %v1711 = vld [vmem:[%s3 + $0xd78] sm:$0xff]
    %v1712 = vld [vmem:[%s3 + $0xd80] sm:$0xff]
    %v1713 = vld [vmem:[%s3 + $0xd88] sm:$0xff]
    %v1714 = vld [vmem:[%s3 + $0xd90] sm:$0xff]
    %v1715 = vld [vmem:[%s3 + $0xd98] sm:$0xff]
    %v1716 = vld [vmem:[%s3 + $0xda0] sm:$0xff]
    %v1717 = vld [vmem:[%s3 + $0xda8] sm:$0xff]
    %v1718 = vld [vmem:[%s3 + $0xdb0] sm:$0xff]
    %v1719 = vld [vmem:[%s3 + $0xdb8] sm:$0xff]
    %v1720 = vld [vmem:[%s3 + $0xdc0] sm:$0xff]
    %v1721 = vld [vmem:[%s3 + $0xdc8] sm:$0xff]
    %v1722 = vld [vmem:[%s3 + $0xdd0] sm:$0xff]
    %v1723 = vld [vmem:[%s3 + $0xdd8] sm:$0xff]
    %v1724 = vld [vmem:[%s3 + $0xde0] sm:$0xff]
    %v1725 = vld [vmem:[%s3 + $0xde8] sm:$0xff]
    %v1726 = vld [vmem:[%s3 + $0xdf0] sm:$0xff]
    %v1727 = vld [vmem:[%s3 + $0xdf8] sm:$0xff]
    %v1728 = vld [vmem:[%s3 + $0xe00] sm:$0xff]
    %v1729 = vld [vmem:[%s3 + $0xe08] sm:$0xff]
    %v1730 = vld [vmem:[%s3 + $0xe10] sm:$0xff]
    %v1731 = vld [vmem:[%s3 + $0xe18] sm:$0xff]
    %v1732 = vld [vmem:[%s3 + $0xe20] sm:$0xff]
    %v1733 = vld [vmem:[%s3 + $0xe28] sm:$0xff]
    %v1734 = vld [vmem:[%s3 + $0xe30] sm:$0xff]
    %v1735 = vld [vmem:[%s3 + $0xe38] sm:$0xff]
    %v1736 = vld [vmem:[%s3 + $0xe40] sm:$0xff]
    %v1737 = vld [vmem:[%s3 + $0xe48] sm:$0xff]
    %v1738 = vld [vmem:[%s3 + $0xe50] sm:$0xff]
    %v1739 = vld [vmem:[%s3 + $0xe58] sm:$0xff]
    %v1740 = vld [vmem:[%s3 + $0xe60] sm:$0xff]
    %v1741 = vld [vmem:[%s3 + $0xe68] sm:$0xff]
    %v1742 = vld [vmem:[%s3 + $0xe70] sm:$0xff]
    %v1743 = vld [vmem:[%s3 + $0xe78] sm:$0xff]
    %v1744 = vld [vmem:[%s3 + $0xe80] sm:$0xff]
    %v1745 = vld [vmem:[%s3 + $0xe88] sm:$0xff]
    %v1746 = vld [vmem:[%s3 + $0xe90] sm:$0xff]
    %v1747 = vld [vmem:[%s3 + $0xe98] sm:$0xff]
    %v1748 = vld [vmem:[%s3 + $0xea0] sm:$0xff]
    %v1749 = vld [vmem:[%s3 + $0xea8] sm:$0xff]
    %v1750 = vld [vmem:[%s3 + $0xeb0] sm:$0xff]
    %v1751 = vld [vmem:[%s3 + $0xeb8] sm:$0xff]
    %v1752 = vld [vmem:[%s3 + $0xec0] sm:$0xff]
    %v1753 = vld [vmem:[%s3 + $0xec8] sm:$0xff]
    %v1754 = vld [vmem:[%s3 + $0xed0] sm:$0xff]
    %v1755 = vld [vmem:[%s3 + $0xed8] sm:$0xff]
    %v1756 = vld [vmem:[%s3 + $0xee0] sm:$0xff]
    %v1757 = vld [vmem:[%s3 + $0xee8] sm:$0xff]
    %v1758 = vld [vmem:[%s3 + $0xef0] sm:$0xff]
    %v1759 = vld [vmem:[%s3 + $0xef8] sm:$0xff]
    %v1760 = vld [vmem:[%s3 + $0xf00] sm:$0xff]
    %v1761 = vld [vmem:[%s3 + $0xf08] sm:$0xff]
    %v1762 = vld [vmem:[%s3 + $0xf10] sm:$0xff]
    %v1763 = vld [vmem:[%s3 + $0xf18] sm:$0xff]
    %v1764 = vld [vmem:[%s3 + $0xf20] sm:$0xff]
    %v1765 = vld [vmem:[%s3 + $0xf28] sm:$0xff]
    %v1766 = vld [vmem:[%s3 + $0xf30] sm:$0xff]
    %v1767 = vld [vmem:[%s3 + $0xf38] sm:$0xff]
    %v1768 = vld [vmem:[%s3 + $0xf40] sm:$0xff]
    %v1769 = vld [vmem:[%s3 + $0xf48] sm:$0xff]
    %v1770 = vld [vmem:[%s3 + $0xf50] sm:$0xff]
    %v1771 = vld [vmem:[%s3 + $0xf58] sm:$0xff]
    %v1772 = vld [vmem:[%s3 + $0xf60] sm:$0xff]
    %v1773 = vld [vmem:[%s3 + $0xf68] sm:$0xff]
    %v1774 = vld [vmem:[%s3 + $0xf70] sm:$0xff]
    %v1775 = vld [vmem:[%s3 + $0xf78] sm:$0xff]
    %v1776 = vld [vmem:[%s3 + $0xf80] sm:$0xff]
    %v1777 = vld [vmem:[%s3 + $0xf88] sm:$0xff]
    %v1778 = vld [vmem:[%s3 + $0xf90] sm:$0xff]
    %v1779 = vld [vmem:[%s3 + $0xf98] sm:$0xff]
    %v1780 = vld [vmem:[%s3 + $0xfa0] sm:$0xff]
    %v1781 = vld [vmem:[%s3 + $0xfa8] sm:$0xff]
    %v1782 = vld [vmem:[%s3 + $0xfb0] sm:$0xff]
    %v1783 = vld [vmem:[%s3 + $0xfb8] sm:$0xff]
    %v1784 = vld [vmem:[%s3 + $0xfc0] sm:$0xff]
    %v1785 = vld [vmem:[%s3 + $0xfc8] sm:$0xff]
    %v1786 = vld [vmem:[%s3 + $0xfd0] sm:$0xff]
    %v1787 = vld [vmem:[%s3 + $0xfd8] sm:$0xff]
    %v1788 = vld [vmem:[%s3 + $0xfe0] sm:$0xff]
    %v1789 = vld [vmem:[%s3 + $0xfe8] sm:$0xff]
    %v1790 = vld [vmem:[%s3 + $0xff0] sm:$0xff]
    %v1791 = vld [vmem:[%s3 + $0xff8] sm:$0xff]
    %v1792 = vld [vmem:[#allocation2] sm:$0x1]
    %s1793 = vtos %v1792
    %v1794 = vstv %s1793
    %1795 = vmatpush.msra.mxu0 %v1295
    %1796 = vmatpush.msra.mxu0 %v1294
    %1797 = vmatpush.msra.mxu0 %v1293
    %1798 = vmatpush.msra.mxu0 %v1292
    %1799 = vmatpush.msra.mxu0 %v1291
    %1800 = vmatpush.msra.mxu0 %v1290
    %1801 = vmatpush.msra.mxu0 %v1289
    %1802 = vmatpush.msra.mxu0 %v1288
    %1803 = vmatpush.msra.mxu0 %v1287
    %1804 = vmatpush.msra.mxu0 %v1286
    %1805 = vmatpush.msra.mxu0 %v1285
    %1806 = vmatpush.msra.mxu0 %v1284
    %1807 = vmatpush.msra.mxu0 %v1283
    %1808 = vmatpush.msra.mxu0 %v1282
    %1809 = vmatpush.msra.mxu0 %v1281
    %1810 = vmatpush.msra.mxu0 %v1280
    %1811 = vmatmul.f32.gmra.mxu0 %v1248
    %v1812 = vpop.f32.mrf.mxu0
    %v1813 = vadd.f32 %v1794, %v1812
    %1814 = vdwg.mxu0
    %1815 = vmatpush.msra.mxu0 %v1311
    %1816 = vmatpush.msra.mxu0 %v1310
    %1817 = vmatpush.msra.mxu0 %v1309
    %1818 = vmatpush.msra.mxu0 %v1308
    %1819 = vmatpush.msra.mxu0 %v1307
    %1820 = vmatpush.msra.mxu0 %v1306
    %1821 = vmatpush.msra.mxu0 %v1305
    %1822 = vmatpush.msra.mxu0 %v1304
    %1823 = vmatpush.msra.mxu0 %v1303
    %1824 = vmatpush.msra.mxu0 %v1302
    %1825 = vmatpush.msra.mxu0 %v1301
    %1826 = vmatpush.msra.mxu0 %v1300
    %1827 = vmatpush.msra.mxu0 %v1299
    %1828 = vmatpush.msra.mxu0 %v1298
    %1829 = vmatpush.msra.mxu0 %v1297
    %1830 = vmatpush.msra.mxu0 %v1296
    %1831 = vmatmul.f32.gmra.mxu0 %v1249
    %v1832 = vpop.f32.mrf.mxu0
    %v1833 = vadd.f32 %v1813, %v1832
    %1834 = vdwg.mxu0
    %1835 = vmatpush.msra.mxu0 %v1327
    %1836 = vmatpush.msra.mxu0 %v1326
    %1837 = vmatpush.msra.mxu0 %v1325
    %1838 = vmatpush.msra.mxu0 %v1324
    %1839 = vmatpush.msra.mxu0 %v1323
    %1840 = vmatpush.msra.mxu0 %v1322
    %1841 = vmatpush.msra.mxu0 %v1321
    %1842 = vmatpush.msra.mxu0 %v1320
    %1843 = vmatpush.msra.mxu0 %v1319
    %1844 = vmatpush.msra.mxu0 %v1318
    %1845 = vmatpush.msra.mxu0 %v1317
    %1846 = vmatpush.msra.mxu0 %v1316
    %1847 = vmatpush.msra.mxu0 %v1315
    %1848 = vmatpush.msra.mxu0 %v1314
    %1849 = vmatpush.msra.mxu0 %v1313
    %1850 = vmatpush.msra.mxu0 %v1312
    %1851 = vmatmul.f32.gmra.mxu0 %v1250
    %v1852 = vpop.f32.mrf.mxu0
    %v1853 = vadd.f32 %v1833, %v1852
    %1854 = vdwg.mxu0
    %1855 = vmatpush.msra.mxu0 %v1343
    %1856 = vmatpush.msra.mxu0 %v1342
    %1857 = vmatpush.msra.mxu0 %v1341
    %1858 = vmatpush.msra.mxu0 %v1340
    %1859 = vmatpush.msra.mxu0 %v1339
    %1860 = vmatpush.msra.mxu0 %v1338
    %1861 = vmatpush.msra.mxu0 %v1337
    %1862 = vmatpush.msra.mxu0 %v1336
    %1863 = vmatpush.msra.mxu0 %v1335
    %1864 = vmatpush.msra.mxu0 %v1334
    %1865 = vmatpush.msra.mxu0 %v1333
    %1866 = vmatpush.msra.mxu0 %v1332
    %1867 = vmatpush.msra.mxu0 %v1331
    %1868 = vmatpush.msra.mxu0 %v1330
    %1869 = vmatpush.msra.mxu0 %v1329
    %1870 = vmatpush.msra.mxu0 %v1328
    %1871 = vmatmul.f32.gmra.mxu0 %v1251
    %v1872 = vpop.f32.mrf.mxu0
    %v1873 = vadd.f32 %v1853, %v1872
    %1874 = vdwg.mxu0
    %1875 = vmatpush.msra.mxu0 %v1359
    %1876 = vmatpush.msra.mxu0 %v1358
    %1877 = vmatpush.msra.mxu0 %v1357
    %1878 = vmatpush.msra.mxu0 %v1356
    %1879 = vmatpush.msra.mxu0 %v1355
    %1880 = vmatpush.msra.mxu0 %v1354
    %1881 = vmatpush.msra.mxu0 %v1353
    %1882 = vmatpush.msra.mxu0 %v1352
    %1883 = vmatpush.msra.mxu0 %v1351
    %1884 = vmatpush.msra.mxu0 %v1350
    %1885 = vmatpush.msra.mxu0 %v1349
    %1886 = vmatpush.msra.mxu0 %v1348
    %1887 = vmatpush.msra.mxu0 %v1347
    %1888 = vmatpush.msra.mxu0 %v1346
    %1889 = vmatpush.msra.mxu0 %v1345
    %1890 = vmatpush.msra.mxu0 %v1344
    %1891 = vmatmul.f32.gmra.mxu0 %v1252
    %v1892 = vpop.f32.mrf.mxu0
    %v1893 = vadd.f32 %v1873, %v1892
    %1894 = vdwg.mxu0
    %1895 = vmatpush.msra.mxu0 %v1375
    %1896 = vmatpush.msra.mxu0 %v1374
    %1897 = vmatpush.msra.mxu0 %v1373
    %1898 = vmatpush.msra.mxu0 %v1372
    %1899 = vmatpush.msra.mxu0 %v1371
    %1900 = vmatpush.msra.mxu0 %v1370
    %1901 = vmatpush.msra.mxu0 %v1369
    %1902 = vmatpush.msra.mxu0 %v1368
    %1903 = vmatpush.msra.mxu0 %v1367
    %1904 = vmatpush.msra.mxu0 %v1366
    %1905 = vmatpush.msra.mxu0 %v1365
    %1906 = vmatpush.msra.mxu0 %v1364
    %1907 = vmatpush.msra.mxu0 %v1363
    %1908 = vmatpush.msra.mxu0 %v1362
    %1909 = vmatpush.msra.mxu0 %v1361
    %1910 = vmatpush.msra.mxu0 %v1360
    %1911 = vmatmul.f32.gmra.mxu0 %v1253
    %v1912 = vpop.f32.mrf.mxu0
    %v1913 = vadd.f32 %v1893, %v1912
    %1914 = vdwg.mxu0
    %1915 = vmatpush.msra.mxu0 %v1391
    %1916 = vmatpush.msra.mxu0 %v1390
    %1917 = vmatpush.msra.mxu0 %v1389
    %1918 = vmatpush.msra.mxu0 %v1388
    %1919 = vmatpush.msra.mxu0 %v1387
    %1920 = vmatpush.msra.mxu0 %v1386
    %1921 = vmatpush.msra.mxu0 %v1385
    %1922 = vmatpush.msra.mxu0 %v1384
    %1923 = vmatpush.msra.mxu0 %v1383
    %1924 = vmatpush.msra.mxu0 %v1382
    %1925 = vmatpush.msra.mxu0 %v1381
    %1926 = vmatpush.msra.mxu0 %v1380
    %1927 = vmatpush.msra.mxu0 %v1379
    %1928 = vmatpush.msra.mxu0 %v1378
    %1929 = vmatpush.msra.mxu0 %v1377
    %1930 = vmatpush.msra.mxu0 %v1376
    %1931 = vmatmul.f32.gmra.mxu0 %v1254
    %v1932 = vpop.f32.mrf.mxu0
    %v1933 = vadd.f32 %v1913, %v1932
    %1934 = vdwg.mxu0
    %1935 = vmatpush.msra.mxu0 %v1407
    %1936 = vmatpush.msra.mxu0 %v1406
    %1937 = vmatpush.msra.mxu0 %v1405
    %1938 = vmatpush.msra.mxu0 %v1404
    %1939 = vmatpush.msra.mxu0 %v1403
    %1940 = vmatpush.msra.mxu0 %v1402
    %1941 = vmatpush.msra.mxu0 %v1401
    %1942 = vmatpush.msra.mxu0 %v1400
    %1943 = vmatpush.msra.mxu0 %v1399
    %1944 = vmatpush.msra.mxu0 %v1398
    %1945 = vmatpush.msra.mxu0 %v1397
    %1946 = vmatpush.msra.mxu0 %v1396
    %1947 = vmatpush.msra.mxu0 %v1395
    %1948 = vmatpush.msra.mxu0 %v1394
    %1949 = vmatpush.msra.mxu0 %v1393
    %1950 = vmatpush.msra.mxu0 %v1392
    %1951 = vmatmul.f32.gmra.mxu0 %v1255
    %v1952 = vpop.f32.mrf.mxu0
    %v1953 = vadd.f32 %v1933, %v1952
    %1954 = vdwg.mxu0
    %1955 = vmatpush.msra.mxu0 %v1423
    %1956 = vmatpush.msra.mxu0 %v1422
    %1957 = vmatpush.msra.mxu0 %v1421
    %1958 = vmatpush.msra.mxu0 %v1420
    %1959 = vmatpush.msra.mxu0 %v1419
    %1960 = vmatpush.msra.mxu0 %v1418
    %1961 = vmatpush.msra.mxu0 %v1417
    %1962 = vmatpush.msra.mxu0 %v1416
    %1963 = vmatpush.msra.mxu0 %v1415
    %1964 = vmatpush.msra.mxu0 %v1414
    %1965 = vmatpush.msra.mxu0 %v1413
    %1966 = vmatpush.msra.mxu0 %v1412
    %1967 = vmatpush.msra.mxu0 %v1411
    %1968 = vmatpush.msra.mxu0 %v1410
    %1969 = vmatpush.msra.mxu0 %v1409
    %1970 = vmatpush.msra.mxu0 %v1408
    %1971 = vmatmul.f32.gmra.mxu0 %v1256
    %v1972 = vpop.f32.mrf.mxu0
    %v1973 = vadd.f32 %v1953, %v1972
    %1974 = vdwg.mxu0
    %1975 = vmatpush.msra.mxu0 %v1439
    %1976 = vmatpush.msra.mxu0 %v1438
    %1977 = vmatpush.msra.mxu0 %v1437
    %1978 = vmatpush.msra.mxu0 %v1436
    %1979 = vmatpush.msra.mxu0 %v1435
    %1980 = vmatpush.msra.mxu0 %v1434
    %1981 = vmatpush.msra.mxu0 %v1433
    %1982 = vmatpush.msra.mxu0 %v1432
    %1983 = vmatpush.msra.mxu0 %v1431
    %1984 = vmatpush.msra.mxu0 %v1430
    %1985 = vmatpush.msra.mxu0 %v1429
    %1986 = vmatpush.msra.mxu0 %v1428
    %1987 = vmatpush.msra.mxu0 %v1427
    %1988 = vmatpush.msra.mxu0 %v1426
    %1989 = vmatpush.msra.mxu0 %v1425
    %1990 = vmatpush.msra.mxu0 %v1424
    %1991 = vmatmul.f32.gmra.mxu0 %v1257
    %v1992 = vpop.f32.mrf.mxu0
    %v1993 = vadd.f32 %v1973, %v1992
    %1994 = vdwg.mxu0
    %1995 = vmatpush.msra.mxu0 %v1455
    %1996 = vmatpush.msra.mxu0 %v1454
    %1997 = vmatpush.msra.mxu0 %v1453
    %1998 = vmatpush.msra.mxu0 %v1452
    %1999 = vmatpush.msra.mxu0 %v1451
    %2000 = vmatpush.msra.mxu0 %v1450
    %2001 = vmatpush.msra.mxu0 %v1449
    %2002 = vmatpush.msra.mxu0 %v1448
    %2003 = vmatpush.msra.mxu0 %v1447
    %2004 = vmatpush.msra.mxu0 %v1446
    %2005 = vmatpush.msra.mxu0 %v1445
    %2006 = vmatpush.msra.mxu0 %v1444
    %2007 = vmatpush.msra.mxu0 %v1443
    %2008 = vmatpush.msra.mxu0 %v1442
    %2009 = vmatpush.msra.mxu0 %v1441
    %2010 = vmatpush.msra.mxu0 %v1440
    %2011 = vmatmul.f32.gmra.mxu0 %v1258
    %v2012 = vpop.f32.mrf.mxu0
    %v2013 = vadd.f32 %v1993, %v2012
    %2014 = vdwg.mxu0
    %2015 = vmatpush.msra.mxu0 %v1471
    %2016 = vmatpush.msra.mxu0 %v1470
    %2017 = vmatpush.msra.mxu0 %v1469
    %2018 = vmatpush.msra.mxu0 %v1468
    %2019 = vmatpush.msra.mxu0 %v1467
    %2020 = vmatpush.msra.mxu0 %v1466
    %2021 = vmatpush.msra.mxu0 %v1465
    %2022 = vmatpush.msra.mxu0 %v1464
    %2023 = vmatpush.msra.mxu0 %v1463
    %2024 = vmatpush.msra.mxu0 %v1462
    %2025 = vmatpush.msra.mxu0 %v1461
    %2026 = vmatpush.msra.mxu0 %v1460
    %2027 = vmatpush.msra.mxu0 %v1459
    %2028 = vmatpush.msra.mxu0 %v1458
    %2029 = vmatpush.msra.mxu0 %v1457
    %2030 = vmatpush.msra.mxu0 %v1456
    %2031 = vmatmul.f32.gmra.mxu0 %v1259
    %v2032 = vpop.f32.mrf.mxu0
    %v2033 = vadd.f32 %v2013, %v2032
    %2034 = vdwg.mxu0
    %2035 = vmatpush.msra.mxu0 %v1487
    %2036 = vmatpush.msra.mxu0 %v1486
    %2037 = vmatpush.msra.mxu0 %v1485
    %2038 = vmatpush.msra.mxu0 %v1484
    %2039 = vmatpush.msra.mxu0 %v1483
    %2040 = vmatpush.msra.mxu0 %v1482
    %2041 = vmatpush.msra.mxu0 %v1481
    %2042 = vmatpush.msra.mxu0 %v1480
    %2043 = vmatpush.msra.mxu0 %v1479
    %2044 = vmatpush.msra.mxu0 %v1478
    %2045 = vmatpush.msra.mxu0 %v1477
    %2046 = vmatpush.msra.mxu0 %v1476
    %2047 = vmatpush.msra.mxu0 %v1475
    %2048 = vmatpush.msra.mxu0 %v1474
    %2049 = vmatpush.msra.mxu0 %v1473
    %2050 = vmatpush.msra.mxu0 %v1472
    %2051 = vmatmul.f32.gmra.mxu0 %v1260
    %v2052 = vpop.f32.mrf.mxu0
    %v2053 = vadd.f32 %v2033, %v2052
    %2054 = vdwg.mxu0
    %2055 = vmatpush.msra.mxu0 %v1503
    %2056 = vmatpush.msra.mxu0 %v1502
    %2057 = vmatpush.msra.mxu0 %v1501
    %2058 = vmatpush.msra.mxu0 %v1500
    %2059 = vmatpush.msra.mxu0 %v1499
    %2060 = vmatpush.msra.mxu0 %v1498
    %2061 = vmatpush.msra.mxu0 %v1497
    %2062 = vmatpush.msra.mxu0 %v1496
    %2063 = vmatpush.msra.mxu0 %v1495
    %2064 = vmatpush.msra.mxu0 %v1494
    %2065 = vmatpush.msra.mxu0 %v1493
    %2066 = vmatpush.msra.mxu0 %v1492
    %2067 = vmatpush.msra.mxu0 %v1491
    %2068 = vmatpush.msra.mxu0 %v1490
    %2069 = vmatpush.msra.mxu0 %v1489
    %2070 = vmatpush.msra.mxu0 %v1488
    %2071 = vmatmul.f32.gmra.mxu0 %v1261
    %v2072 = vpop.f32.mrf.mxu0
    %v2073 = vadd.f32 %v2053, %v2072
    %2074 = vdwg.mxu0
    %2075 = vmatpush.msra.mxu0 %v1519
    %2076 = vmatpush.msra.mxu0 %v1518
    %2077 = vmatpush.msra.mxu0 %v1517
    %2078 = vmatpush.msra.mxu0 %v1516
    %2079 = vmatpush.msra.mxu0 %v1515
    %2080 = vmatpush.msra.mxu0 %v1514
    %2081 = vmatpush.msra.mxu0 %v1513
    %2082 = vmatpush.msra.mxu0 %v1512
    %2083 = vmatpush.msra.mxu0 %v1511
    %2084 = vmatpush.msra.mxu0 %v1510
    %2085 = vmatpush.msra.mxu0 %v1509
    %2086 = vmatpush.msra.mxu0 %v1508
    %2087 = vmatpush.msra.mxu0 %v1507
    %2088 = vmatpush.msra.mxu0 %v1506
    %2089 = vmatpush.msra.mxu0 %v1505
    %2090 = vmatpush.msra.mxu0 %v1504
    %2091 = vmatmul.f32.gmra.mxu0 %v1262
    %v2092 = vpop.f32.mrf.mxu0
    %v2093 = vadd.f32 %v2073, %v2092
    %2094 = vdwg.mxu0
    %2095 = vmatpush.msra.mxu0 %v1535
    %2096 = vmatpush.msra.mxu0 %v1534
    %2097 = vmatpush.msra.mxu0 %v1533
    %2098 = vmatpush.msra.mxu0 %v1532
    %2099 = vmatpush.msra.mxu0 %v1531
    %2100 = vmatpush.msra.mxu0 %v1530
    %2101 = vmatpush.msra.mxu0 %v1529
    %2102 = vmatpush.msra.mxu0 %v1528
    %2103 = vmatpush.msra.mxu0 %v1527
    %2104 = vmatpush.msra.mxu0 %v1526
    %2105 = vmatpush.msra.mxu0 %v1525
    %2106 = vmatpush.msra.mxu0 %v1524
    %2107 = vmatpush.msra.mxu0 %v1523
    %2108 = vmatpush.msra.mxu0 %v1522
    %2109 = vmatpush.msra.mxu0 %v1521
    %2110 = vmatpush.msra.mxu0 %v1520
    %2111 = vmatmul.f32.gmra.mxu0 %v1263
    %v2112 = vpop.f32.mrf.mxu0
    %v2113 = vadd.f32 %v2093, %v2112
    %2114 = vdwg.mxu0
    %2115 = vmatpush.msra.mxu0 %v1551
    %2116 = vmatpush.msra.mxu0 %v1550
    %2117 = vmatpush.msra.mxu0 %v1549
    %2118 = vmatpush.msra.mxu0 %v1548
    %2119 = vmatpush.msra.mxu0 %v1547
    %2120 = vmatpush.msra.mxu0 %v1546
    %2121 = vmatpush.msra.mxu0 %v1545
    %2122 = vmatpush.msra.mxu0 %v1544
    %2123 = vmatpush.msra.mxu0 %v1543
    %2124 = vmatpush.msra.mxu0 %v1542
    %2125 = vmatpush.msra.mxu0 %v1541
    %2126 = vmatpush.msra.mxu0 %v1540
    %2127 = vmatpush.msra.mxu0 %v1539
    %2128 = vmatpush.msra.mxu0 %v1538
    %2129 = vmatpush.msra.mxu0 %v1537
    %2130 = vmatpush.msra.mxu0 %v1536
    %2131 = vmatmul.f32.gmra.mxu0 %v1264
    %v2132 = vpop.f32.mrf.mxu0
    %v2133 = vadd.f32 %v2113, %v2132
    %2134 = vdwg.mxu0
    %2135 = vmatpush.msra.mxu0 %v1567
    %2136 = vmatpush.msra.mxu0 %v1566
    %2137 = vmatpush.msra.mxu0 %v1565
    %2138 = vmatpush.msra.mxu0 %v1564
    %2139 = vmatpush.msra.mxu0 %v1563
    %2140 = vmatpush.msra.mxu0 %v1562
    %2141 = vmatpush.msra.mxu0 %v1561
    %2142 = vmatpush.msra.mxu0 %v1560
    %2143 = vmatpush.msra.mxu0 %v1559
    %2144 = vmatpush.msra.mxu0 %v1558
    %2145 = vmatpush.msra.mxu0 %v1557
    %2146 = vmatpush.msra.mxu0 %v1556
    %2147 = vmatpush.msra.mxu0 %v1555
    %2148 = vmatpush.msra.mxu0 %v1554
    %2149 = vmatpush.msra.mxu0 %v1553
    %2150 = vmatpush.msra.mxu0 %v1552
    %2151 = vmatmul.f32.gmra.mxu0 %v1265
    %v2152 = vpop.f32.mrf.mxu0
    %v2153 = vadd.f32 %v2133, %v2152
    %2154 = vdwg.mxu0
    %2155 = vmatpush.msra.mxu0 %v1583
    %2156 = vmatpush.msra.mxu0 %v1582
    %2157 = vmatpush.msra.mxu0 %v1581
    %2158 = vmatpush.msra.mxu0 %v1580
    %2159 = vmatpush.msra.mxu0 %v1579
    %2160 = vmatpush.msra.mxu0 %v1578
    %2161 = vmatpush.msra.mxu0 %v1577
    %2162 = vmatpush.msra.mxu0 %v1576
    %2163 = vmatpush.msra.mxu0 %v1575
    %2164 = vmatpush.msra.mxu0 %v1574
    %2165 = vmatpush.msra.mxu0 %v1573
    %2166 = vmatpush.msra.mxu0 %v1572
    %2167 = vmatpush.msra.mxu0 %v1571
    %2168 = vmatpush.msra.mxu0 %v1570
    %2169 = vmatpush.msra.mxu0 %v1569
    %2170 = vmatpush.msra.mxu0 %v1568
    %2171 = vmatmul.f32.gmra.mxu0 %v1266
    %v2172 = vpop.f32.mrf.mxu0
    %v2173 = vadd.f32 %v2153, %v2172
    %2174 = vdwg.mxu0
    %2175 = vmatpush.msra.mxu0 %v1599
    %2176 = vmatpush.msra.mxu0 %v1598
    %2177 = vmatpush.msra.mxu0 %v1597
    %2178 = vmatpush.msra.mxu0 %v1596
    %2179 = vmatpush.msra.mxu0 %v1595
    %2180 = vmatpush.msra.mxu0 %v1594
    %2181 = vmatpush.msra.mxu0 %v1593
    %2182 = vmatpush.msra.mxu0 %v1592
    %2183 = vmatpush.msra.mxu0 %v1591
    %2184 = vmatpush.msra.mxu0 %v1590
    %2185 = vmatpush.msra.mxu0 %v1589
    %2186 = vmatpush.msra.mxu0 %v1588
    %2187 = vmatpush.msra.mxu0 %v1587
    %2188 = vmatpush.msra.mxu0 %v1586
    %2189 = vmatpush.msra.mxu0 %v1585
    %2190 = vmatpush.msra.mxu0 %v1584
    %2191 = vmatmul.f32.gmra.mxu0 %v1267
    %v2192 = vpop.f32.mrf.mxu0
    %v2193 = vadd.f32 %v2173, %v2192
    %2194 = vdwg.mxu0
    %2195 = vmatpush.msra.mxu0 %v1615
    %2196 = vmatpush.msra.mxu0 %v1614
    %2197 = vmatpush.msra.mxu0 %v1613
    %2198 = vmatpush.msra.mxu0 %v1612
    %2199 = vmatpush.msra.mxu0 %v1611
    %2200 = vmatpush.msra.mxu0 %v1610
    %2201 = vmatpush.msra.mxu0 %v1609
    %2202 = vmatpush.msra.mxu0 %v1608
    %2203 = vmatpush.msra.mxu0 %v1607
    %2204 = vmatpush.msra.mxu0 %v1606
    %2205 = vmatpush.msra.mxu0 %v1605
    %2206 = vmatpush.msra.mxu0 %v1604
    %2207 = vmatpush.msra.mxu0 %v1603
    %2208 = vmatpush.msra.mxu0 %v1602
    %2209 = vmatpush.msra.mxu0 %v1601
    %2210 = vmatpush.msra.mxu0 %v1600
    %2211 = vmatmul.f32.gmra.mxu0 %v1268
    %v2212 = vpop.f32.mrf.mxu0
    %v2213 = vadd.f32 %v2193, %v2212
    %2214 = vdwg.mxu0
    %2215 = vmatpush.msra.mxu0 %v1631
    %2216 = vmatpush.msra.mxu0 %v1630
    %2217 = vmatpush.msra.mxu0 %v1629
    %2218 = vmatpush.msra.mxu0 %v1628
    %2219 = vmatpush.msra.mxu0 %v1627
    %2220 = vmatpush.msra.mxu0 %v1626
    %2221 = vmatpush.msra.mxu0 %v1625
    %2222 = vmatpush.msra.mxu0 %v1624
    %2223 = vmatpush.msra.mxu0 %v1623
    %2224 = vmatpush.msra.mxu0 %v1622
    %2225 = vmatpush.msra.mxu0 %v1621
    %2226 = vmatpush.msra.mxu0 %v1620
    %2227 = vmatpush.msra.mxu0 %v1619
    %2228 = vmatpush.msra.mxu0 %v1618
    %2229 = vmatpush.msra.mxu0 %v1617
    %2230 = vmatpush.msra.mxu0 %v1616
    %2231 = vmatmul.f32.gmra.mxu0 %v1269
    %v2232 = vpop.f32.mrf.mxu0
    %v2233 = vadd.f32 %v2213, %v2232
    %2234 = vdwg.mxu0
    %2235 = vmatpush.msra.mxu0 %v1647
    %2236 = vmatpush.msra.mxu0 %v1646
    %2237 = vmatpush.msra.mxu0 %v1645
    %2238 = vmatpush.msra.mxu0 %v1644
    %2239 = vmatpush.msra.mxu0 %v1643
    %2240 = vmatpush.msra.mxu0 %v1642
    %2241 = vmatpush.msra.mxu0 %v1641
    %2242 = vmatpush.msra.mxu0 %v1640
    %2243 = vmatpush.msra.mxu0 %v1639
    %2244 = vmatpush.msra.mxu0 %v1638
    %2245 = vmatpush.msra.mxu0 %v1637
    %2246 = vmatpush.msra.mxu0 %v1636
    %2247 = vmatpush.msra.mxu0 %v1635
    %2248 = vmatpush.msra.mxu0 %v1634
    %2249 = vmatpush.msra.mxu0 %v1633
    %2250 = vmatpush.msra.mxu0 %v1632
    %2251 = vmatmul.f32.gmra.mxu0 %v1270
    %v2252 = vpop.f32.mrf.mxu0
    %v2253 = vadd.f32 %v2233, %v2252
    %2254 = vdwg.mxu0
    %2255 = vmatpush.msra.mxu0 %v1663
    %2256 = vmatpush.msra.mxu0 %v1662
    %2257 = vmatpush.msra.mxu0 %v1661
    %2258 = vmatpush.msra.mxu0 %v1660
    %2259 = vmatpush.msra.mxu0 %v1659
    %2260 = vmatpush.msra.mxu0 %v1658
    %2261 = vmatpush.msra.mxu0 %v1657
    %2262 = vmatpush.msra.mxu0 %v1656
    %2263 = vmatpush.msra.mxu0 %v1655
    %2264 = vmatpush.msra.mxu0 %v1654
    %2265 = vmatpush.msra.mxu0 %v1653
    %2266 = vmatpush.msra.mxu0 %v1652
    %2267 = vmatpush.msra.mxu0 %v1651
    %2268 = vmatpush.msra.mxu0 %v1650
    %2269 = vmatpush.msra.mxu0 %v1649
    %2270 = vmatpush.msra.mxu0 %v1648
    %2271 = vmatmul.f32.gmra.mxu0 %v1271
    %v2272 = vpop.f32.mrf.mxu0
    %v2273 = vadd.f32 %v2253, %v2272
    %2274 = vdwg.mxu0
    %2275 = vmatpush.msra.mxu0 %v1679
    %2276 = vmatpush.msra.mxu0 %v1678
    %2277 = vmatpush.msra.mxu0 %v1677
    %2278 = vmatpush.msra.mxu0 %v1676
    %2279 = vmatpush.msra.mxu0 %v1675
    %2280 = vmatpush.msra.mxu0 %v1674
    %2281 = vmatpush.msra.mxu0 %v1673
    %2282 = vmatpush.msra.mxu0 %v1672
    %2283 = vmatpush.msra.mxu0 %v1671
    %2284 = vmatpush.msra.mxu0 %v1670
    %2285 = vmatpush.msra.mxu0 %v1669
    %2286 = vmatpush.msra.mxu0 %v1668
    %2287 = vmatpush.msra.mxu0 %v1667
    %2288 = vmatpush.msra.mxu0 %v1666
    %2289 = vmatpush.msra.mxu0 %v1665
    %2290 = vmatpush.msra.mxu0 %v1664
    %2291 = vmatmul.f32.gmra.mxu0 %v1272
    %v2292 = vpop.f32.mrf.mxu0
    %v2293 = vadd.f32 %v2273, %v2292
    %2294 = vdwg.mxu0
    %2295 = vmatpush.msra.mxu0 %v1695
    %2296 = vmatpush.msra.mxu0 %v1694
    %2297 = vmatpush.msra.mxu0 %v1693
    %2298 = vmatpush.msra.mxu0 %v1692
    %2299 = vmatpush.msra.mxu0 %v1691
    %2300 = vmatpush.msra.mxu0 %v1690
    %2301 = vmatpush.msra.mxu0 %v1689
    %2302 = vmatpush.msra.mxu0 %v1688
    %2303 = vmatpush.msra.mxu0 %v1687
    %2304 = vmatpush.msra.mxu0 %v1686
    %2305 = vmatpush.msra.mxu0 %v1685
    %2306 = vmatpush.msra.mxu0 %v1684
    %2307 = vmatpush.msra.mxu0 %v1683
    %2308 = vmatpush.msra.mxu0 %v1682
    %2309 = vmatpush.msra.mxu0 %v1681
    %2310 = vmatpush.msra.mxu0 %v1680
    %2311 = vmatmul.f32.gmra.mxu0 %v1273
    %v2312 = vpop.f32.mrf.mxu0
    %v2313 = vadd.f32 %v2293, %v2312
    %2314 = vdwg.mxu0
    %2315 = vmatpush.msra.mxu0 %v1711
    %2316 = vmatpush.msra.mxu0 %v1710
    %2317 = vmatpush.msra.mxu0 %v1709
    %2318 = vmatpush.msra.mxu0 %v1708
    %2319 = vmatpush.msra.mxu0 %v1707
    %2320 = vmatpush.msra.mxu0 %v1706
    %2321 = vmatpush.msra.mxu0 %v1705
    %2322 = vmatpush.msra.mxu0 %v1704
    %2323 = vmatpush.msra.mxu0 %v1703
    %2324 = vmatpush.msra.mxu0 %v1702
    %2325 = vmatpush.msra.mxu0 %v1701
    %2326 = vmatpush.msra.mxu0 %v1700
    %2327 = vmatpush.msra.mxu0 %v1699
    %2328 = vmatpush.msra.mxu0 %v1698
    %2329 = vmatpush.msra.mxu0 %v1697
    %2330 = vmatpush.msra.mxu0 %v1696
    %2331 = vmatmul.f32.gmra.mxu0 %v1274
    %v2332 = vpop.f32.mrf.mxu0
    %v2333 = vadd.f32 %v2313, %v2332
    %2334 = vdwg.mxu0
    %2335 = vmatpush.msra.mxu0 %v1727
    %2336 = vmatpush.msra.mxu0 %v1726
    %2337 = vmatpush.msra.mxu0 %v1725
    %2338 = vmatpush.msra.mxu0 %v1724
    %2339 = vmatpush.msra.mxu0 %v1723
    %2340 = vmatpush.msra.mxu0 %v1722
    %2341 = vmatpush.msra.mxu0 %v1721
    %2342 = vmatpush.msra.mxu0 %v1720
    %2343 = vmatpush.msra.mxu0 %v1719
    %2344 = vmatpush.msra.mxu0 %v1718
    %2345 = vmatpush.msra.mxu0 %v1717
    %2346 = vmatpush.msra.mxu0 %v1716
    %2347 = vmatpush.msra.mxu0 %v1715
    %2348 = vmatpush.msra.mxu0 %v1714
    %2349 = vmatpush.msra.mxu0 %v1713
    %2350 = vmatpush.msra.mxu0 %v1712
    %2351 = vmatmul.f32.gmra.mxu0 %v1275
    %v2352 = vpop.f32.mrf.mxu0
    %v2353 = vadd.f32 %v2333, %v2352
    %2354 = vdwg.mxu0
    %2355 = vmatpush.msra.mxu0 %v1743
    %2356 = vmatpush.msra.mxu0 %v1742
    %2357 = vmatpush.msra.mxu0 %v1741
    %2358 = vmatpush.msra.mxu0 %v1740
    %2359 = vmatpush.msra.mxu0 %v1739
    %2360 = vmatpush.msra.mxu0 %v1738
    %2361 = vmatpush.msra.mxu0 %v1737
    %2362 = vmatpush.msra.mxu0 %v1736
    %2363 = vmatpush.msra.mxu0 %v1735
    %2364 = vmatpush.msra.mxu0 %v1734
    %2365 = vmatpush.msra.mxu0 %v1733
    %2366 = vmatpush.msra.mxu0 %v1732
    %2367 = vmatpush.msra.mxu0 %v1731
    %2368 = vmatpush.msra.mxu0 %v1730
    %2369 = vmatpush.msra.mxu0 %v1729
    %2370 = vmatpush.msra.mxu0 %v1728
    %2371 = vmatmul.f32.gmra.mxu0 %v1276
    %v2372 = vpop.f32.mrf.mxu0
    %v2373 = vadd.f32 %v2353, %v2372
    %2374 = vdwg.mxu0
    %2375 = vmatpush.msra.mxu0 %v1759
    %2376 = vmatpush.msra.mxu0 %v1758
    %2377 = vmatpush.msra.mxu0 %v1757
    %2378 = vmatpush.msra.mxu0 %v1756
    %2379 = vmatpush.msra.mxu0 %v1755
    %2380 = vmatpush.msra.mxu0 %v1754
    %2381 = vmatpush.msra.mxu0 %v1753
    %2382 = vmatpush.msra.mxu0 %v1752
    %2383 = vmatpush.msra.mxu0 %v1751
    %2384 = vmatpush.msra.mxu0 %v1750
    %2385 = vmatpush.msra.mxu0 %v1749
    %2386 = vmatpush.msra.mxu0 %v1748
    %2387 = vmatpush.msra.mxu0 %v1747
    %2388 = vmatpush.msra.mxu0 %v1746
    %2389 = vmatpush.msra.mxu0 %v1745
    %2390 = vmatpush.msra.mxu0 %v1744
    %2391 = vmatmul.f32.gmra.mxu0 %v1277
    %v2392 = vpop.f32.mrf.mxu0
    %v2393 = vadd.f32 %v2373, %v2392
    %2394 = vdwg.mxu0
    %2395 = vmatpush.msra.mxu0 %v1775
    %2396 = vmatpush.msra.mxu0 %v1774
    %2397 = vmatpush.msra.mxu0 %v1773
    %2398 = vmatpush.msra.mxu0 %v1772
    %2399 = vmatpush.msra.mxu0 %v1771
    %2400 = vmatpush.msra.mxu0 %v1770
    %2401 = vmatpush.msra.mxu0 %v1769
    %2402 = vmatpush.msra.mxu0 %v1768
    %2403 = vmatpush.msra.mxu0 %v1767
    %2404 = vmatpush.msra.mxu0 %v1766
    %2405 = vmatpush.msra.mxu0 %v1765
    %2406 = vmatpush.msra.mxu0 %v1764
    %2407 = vmatpush.msra.mxu0 %v1763
    %2408 = vmatpush.msra.mxu0 %v1762
    %2409 = vmatpush.msra.mxu0 %v1761
    %2410 = vmatpush.msra.mxu0 %v1760
    %2411 = vmatmul.f32.gmra.mxu0 %v1278
    %v2412 = vpop.f32.mrf.mxu0
    %v2413 = vadd.f32 %v2393, %v2412
    %2414 = vdwg.mxu0
    %2415 = vmatpush.msra.mxu0 %v1791
    %2416 = vmatpush.msra.mxu0 %v1790
    %2417 = vmatpush.msra.mxu0 %v1789
    %2418 = vmatpush.msra.mxu0 %v1788
    %2419 = vmatpush.msra.mxu0 %v1787
    %2420 = vmatpush.msra.mxu0 %v1786
    %2421 = vmatpush.msra.mxu0 %v1785
    %2422 = vmatpush.msra.mxu0 %v1784
    %2423 = vmatpush.msra.mxu0 %v1783
    %2424 = vmatpush.msra.mxu0 %v1782
    %2425 = vmatpush.msra.mxu0 %v1781
    %2426 = vmatpush.msra.mxu0 %v1780
    %2427 = vmatpush.msra.mxu0 %v1779
    %2428 = vmatpush.msra.mxu0 %v1778
    %2429 = vmatpush.msra.mxu0 %v1777
    %2430 = vmatpush.msra.mxu0 %v1776
    %2431 = vmatmul.f32.gmra.mxu0 %v1279
    %v2432 = vpop.f32.mrf.mxu0
    %v2433 = vadd.f32 %v2413, %v2432
    %2434 = vdwg.mxu0
    %vm2435 = vcmask 261120
    %2436 = vst.msk [vmem:[#allocation3] sm:$0xff] %vm2435, %v2433
    // Predicated region
    $region22: #{tpu_custom_call.1} parent=1 // pred_check
      _
    $region23: #{tpu_custom_call.1} parent=1 // pred_check_branch
      %2438 = sbr.rel (0) target = $region25
    $region24: #{tpu_custom_call.1} parent=1 // pred_region
      %2440 = vsyncadd [#allocation4], 0
      %s2442 = sshll.u32 [#allocation3], 4
      %s2443 = int_to_ptr.vmem [resolvable:$true] %s2442
      %s2444 = sshll.u32 %s5, 4
      %s2445 = int_to_ptr.hbm [resolvable:$true] %s2444
      %2447 = dma.vmem_to_hbm [thread:$0]  %s2443, 128, %s2445, [#allocation4]
    $region25: #{tpu_custom_call.1} parent=1 // pred_fallthru
      _
    // Predicated region
    $region26: #{tpu_custom_call.1} parent=1 // pred_check
      _
    $region27: #{tpu_custom_call.1} parent=1 // pred_check_branch
      %2449 = sbr.rel (0) target = $region29
    $region28: #{tpu_custom_call.1} parent=1 // pred_region
      %2451 = dma.done [#allocation4], 128
    $region29: #{tpu_custom_call.1} parent=1 // pred_fallthru
      _
    %2452 = vsyncpa [#allocation4], 1

</llo_original>
